<compile_context>
chip_gen: v7x
topology: tpu7x:2x2x1
jax: 0.10.0
libtpu: 0.0.40
codegen_flags: <defaults>
</compile_context>

<pallas_src>
import functools

import numpy as np
import jax
import jax.numpy as jnp
from jax.experimental import pallas as pl
from jax.experimental.pallas import tpu as pltpu

NEG_SLOPE = 0.01
BN_EPS = 1e-5


def _conv_stats_kernel(xp_ref, w_ref, y_ref, s_ref, s2_ref, *, n_rows, pad_rows, row_shift):
    # xp_ref: (1, pad_rows + n_rows, Cin)  zero-padded NHWC input, flattened row-major, with
    #          pad_rows extra zero rows prepended so all 4 shifts are static slices.
    # w_ref:  (4*Cin, 4*Cout)  fused weights: row blocks = shift (dh, dw), col blocks = phase.
    # y_ref:  (1, n_rows, 4*Cout)  pre-bias conv-transpose output, phase-packed on lanes.
    # s_ref / s2_ref: (1, 1, 4*Cout)  per-sample per-column sum / sum-of-squares.
    x_all = xp_ref[0]                                       # (pad_rows + n_rows, Cin)
    shifts = (0, 1, row_shift, row_shift + 1)               # (dh, dw) = (0,0),(0,1),(1,0),(1,1)
    pieces = [x_all[pad_rows - off:pad_rows - off + n_rows, :] for off in shifts]
    x_big = jnp.concatenate(pieces, axis=1)                 # (n_rows, 4*Cin)

    y = jnp.dot(x_big, w_ref[...], preferred_element_type=jnp.float32)  # single MXU matmul
    y_ref[0] = y                                            # written exactly once
    s_ref[0] = jnp.sum(y, axis=0, keepdims=True)            # padded cells are exactly 0
    s2_ref[0] = jnp.sum(y * y, axis=0, keepdims=True)


def _bn_lrelu_kernel(y_ref, scale_ref, shift_ref, o_ref):
    # y_ref/o_ref: (1, n_rows, 4*Cout); scale/shift: (1, 4*Cout) per-column affine.
    z = y_ref[...] * scale_ref[...] + shift_ref[...]
    o_ref[...] = jnp.where(z > 0, z, NEG_SLOPE * z)


def upsample_layer(x_nchw, w, b, gamma, beta):
    """Forward of UpSampleLayer.  x_nchw: (N, Cin, H, W) -> (N, Cout, 2H+1, 2W+1)."""
    N, Ci, H, W = x_nchw.shape
    Co = w.shape[1]
    OH, OW = 2 * H + 1, 2 * W + 1
    Wp2 = W + 2                         # padded width
    n_rows = (H + 2) * Wp2              # flattened padded spatial size
    pad_rows = Wp2 + 1                  # largest flat-row shift (dh=1, dw=1)
    lanes = 4 * Co
    f32 = jnp.float32

    # ---- input layout glue (cheap XLA): NCHW -> NHWC, zero border, flatten, prepend shift rows
    x_nhwc = jnp.transpose(x_nchw, (0, 2, 3, 1)).astype(f32)
    xp = jnp.pad(x_nhwc, ((0, 0), (1, 1), (1, 1), (0, 0)))            # (N, H+2, W+2, Ci)
    xp = xp.reshape(N, n_rows, Ci)
    xp = jnp.pad(xp, ((0, 0), (pad_rows, 0), (0, 0)))                 # (N, pad_rows+n_rows, Ci)

    # ---- fused weight: rows = shift j=(dh,dw), cols = (phase p=(ph,pw), out channel)
    wf = w.astype(f32)                                                # (Ci, Co, 3, 3) torch layout
    zeros_blk = jnp.zeros((Ci, Co), f32)
    row_blocks = []
    for dh in range(2):
        for dw in range(2):
            col_blocks = []
            for ph in range(2):
                for pw in range(2):
                    kh, kw = ph + 2 * dh, pw + 2 * dw
                    col_blocks.append(wf[:, :, kh, kw] if (kh < 3 and kw < 3) else zeros_blk)
            row_blocks.append(jnp.concatenate(col_blocks, axis=1))    # (Ci, 4*Co)
    w_fused = jnp.concatenate(row_blocks, axis=0)                     # (4*Ci, 4*Co)

    cparams = pltpu.CompilerParams(dimension_semantics=("parallel",),
                                   vmem_limit_bytes=48 * 1024 * 1024)
    kernel1 = functools.partial(_conv_stats_kernel, n_rows=n_rows,
                                pad_rows=pad_rows, row_shift=Wp2)

    # ---- pass 1: fused conv-transpose + per-sample BN partial statistics -------------------
    y_raw, s, s2 = pl.pallas_call(
        kernel1,
        grid=(N,),
        in_specs=[
            pl.BlockSpec((1, pad_rows + n_rows, Ci), lambda n: (n, 0, 0)),
            pl.BlockSpec((4 * Ci, lanes), lambda n: (0, 0)),
        ],
        out_specs=(
            pl.BlockSpec((1, n_rows, lanes), lambda n: (n, 0, 0)),
            pl.BlockSpec((1, 1, lanes), lambda n: (n, 0, 0)),
            pl.BlockSpec((1, 1, lanes), lambda n: (n, 0, 0)),
        ),
        out_shape=(
            jax.ShapeDtypeStruct((N, n_rows, lanes), f32),
            jax.ShapeDtypeStruct((N, 1, lanes), f32),
            jax.ShapeDtypeStruct((N, 1, lanes), f32),
        ),
        compiler_params=cparams,
    )(xp, w_fused)

    # ---- BatchNorm2d batch statistics (training mode): tiny cross-batch reduce in XLA ------
    count = jnp.float32(N * OH * OW)
    total = jnp.sum(s.reshape(N, 4, Co), axis=(0, 1))                 # (Co,)
    total_sq = jnp.sum(s2.reshape(N, 4, Co), axis=(0, 1))
    mean0 = total / count                                             # mean of pre-bias conv
    var = jnp.maximum(total_sq / count - mean0 * mean0, 0.0)          # clamp: avoid rsqrt(<0)
    inv = jax.lax.rsqrt(var + BN_EPS)
    bias = b.astype(f32)
    mean_full = mean0 + bias                                          # mean of (conv + bias)
    scale = gamma.astype(f32) * inv
    shift = beta.astype(f32) + (bias - mean_full) * scale             # conv bias cancels exactly
    scale_flat = jnp.tile(scale, 4).reshape(1, lanes)
    shift_flat = jnp.tile(shift, 4).reshape(1, lanes)

    # ---- pass 2: normalize + LeakyReLU (lane-dense elementwise) -----------------------------
    out_flat = pl.pallas_call(
        _bn_lrelu_kernel,
        grid=(N,),
        in_specs=[
            pl.BlockSpec((1, n_rows, lanes), lambda n: (n, 0, 0)),
            pl.BlockSpec((1, lanes), lambda n: (0, 0)),
            pl.BlockSpec((1, lanes), lambda n: (0, 0)),
        ],
        out_specs=pl.BlockSpec((1, n_rows, lanes), lambda n: (n, 0, 0)),
        out_shape=jax.ShapeDtypeStruct((N, n_rows, lanes), f32),
        compiler_params=cparams,
    )(y_raw, scale_flat, shift_flat)

    # ---- output layout glue: free reshape, drop padded border, ONE transpose to NCHW, crop --
    out6 = out_flat.reshape(N, H + 2, Wp2, 2, 2, Co)[:, 1:, 1:, :, :, :]   # (N, H+1, W+1, 2, 2, Co)
    out = jnp.transpose(out6, (0, 5, 1, 3, 2, 4))                          # (N, Co, H+1, 2, W+1, 2)
    out = out.reshape(N, Co, 2 * (H + 1), 2 * (W + 1))
    return out[:, :, :OH, :OW]


def numpy_reference(x, w, b, gamma, beta):
    """Direct NCHW reference following PyTorch ConvTranspose2d/BatchNorm2d/LeakyReLU math."""
    x = np.asarray(x, np.float64)
    w = np.asarray(w, np.float64)
    N, Ci, H, W = x.shape
    Co = w.shape[1]
    OH, OW = 2 * H + 1, 2 * W + 1
    y = np.zeros((N, Co, OH, OW), np.float64)
    for kh in range(3):
        for kw in range(3):
            y[:, :, kh:kh + 2 * H:2, kw:kw + 2 * W:2] += np.einsum(
                'nihw,io->nohw', x, w[:, :, kh, kw])
    y += np.asarray(b, np.float64)[None, :, None, None]
    mean = y.mean(axis=(0, 2, 3), keepdims=True)
    var = y.var(axis=(0, 2, 3), keepdims=True)                        # biased, as BN uses
    yn = (y - mean) / np.sqrt(var + BN_EPS)
    yn = yn * np.asarray(gamma, np.float64)[None, :, None, None] \
         + np.asarray(beta, np.float64)[None, :, None, None]
    return np.where(yn > 0, yn, NEG_SLOPE * yn)


if __name__ == "__main__":
    N, Cin, Cout, H, W = 2, 4, 8, 16, 16

    key = jax.random.PRNGKey(0)
    k1, k2, k3, k4, k5 = jax.random.split(key, 5)
    x = jax.random.normal(k1, (N, Cin, H, W), dtype=jnp.float32)
    w = jax.random.normal(k2, (Cin, Cout, 3, 3), dtype=jnp.float32) * 0.1
    b = jax.random.normal(k3, (Cout,), dtype=jnp.float32) * 0.1
    gamma = 1.0 + 0.1 * jax.random.normal(k4, (Cout,), dtype=jnp.float32)
    beta = 0.1 * jax.random.normal(k5, (Cout,), dtype=jnp.float32)

    out = jax.block_until_ready(jax.jit(upsample_layer)(x, w, b, gamma, beta))

    ref = numpy_reference(np.asarray(x), np.asarray(w), np.asarray(b),
                          np.asarray(gamma), np.asarray(beta))

    assert out.shape == (N, Cout, 2 * H + 1, 2 * W + 1), out.shape
    np.testing.assert_allclose(np.asarray(out), ref, rtol=2e-3, atol=2e-3)
    print("KERNEL_OK")
</pallas_src>

<mosaic_0001>
module attributes {stable_mosaic.version = 11 : i64} {
  func.func @_conv_stats_kernel(%arg0: i32, %arg1: memref<1x343x4xf32, #tpu.memory_space<vmem>>, %arg2: memref<16x32xf32, #tpu.memory_space<vmem>>, %arg3: memref<1x324x32xf32, #tpu.memory_space<vmem>>, %arg4: memref<1x1x32xf32, #tpu.memory_space<vmem>>, %arg5: memref<1x1x32xf32, #tpu.memory_space<vmem>>) attributes {dimension_semantics = [#tpu.dimension_semantics<parallel>], iteration_bounds = array<i64: 2>, scalar_prefetch = 0 : i64, scratch_operands = 0 : i64, tpu.core_type = #tpu.core_type<tc>, window_params = [{transform_indices = @transform_0, window_bounds = array<i64: 1, 343, 4>}, {pipeline_mode = #tpu.pipeline_mode<synchronous>, transform_indices = @transform_1, window_bounds = array<i64: 16, 32>}, {transform_indices = @transform_2, window_bounds = array<i64: 1, 324, 32>}, {transform_indices = @transform_3, window_bounds = array<i64: 1, 1, 32>}, {transform_indices = @transform_4, window_bounds = array<i64: 1, 1, 32>}]} {
    %c0 = arith.constant 0 : index
    %c0_0 = arith.constant 0 : index
    %c0_1 = arith.constant 0 : index
    %0 = vector.load %arg1[%c0, %c0_0, %c0_1] : memref<1x343x4xf32, #tpu.memory_space<vmem>>, vector<1x343x4xf32>
    %1 = vector.shape_cast %0 : vector<1x343x4xf32> to vector<343x4xf32>
    %2 = vector.extract_strided_slice %1 {offsets = [19, 0], sizes = [324, 4], strides = [1, 1]} : vector<343x4xf32> to vector<324x4xf32>
    %3 = vector.extract_strided_slice %1 {offsets = [18, 0], sizes = [324, 4], strides = [1, 1]} : vector<343x4xf32> to vector<324x4xf32>
    %4 = vector.extract_strided_slice %1 {offsets = [1, 0], sizes = [324, 4], strides = [1, 1]} : vector<343x4xf32> to vector<324x4xf32>
    %5 = vector.extract_strided_slice %1 {offsets = [0, 0], sizes = [324, 4], strides = [1, 1]} : vector<343x4xf32> to vector<324x4xf32>
    %6 = tpu.concatenate %2, %3, %4, %5 in 1 : vector<324x4xf32>, vector<324x4xf32>, vector<324x4xf32>, vector<324x4xf32> -> vector<324x16xf32>
    %c0_2 = arith.constant 0 : index
    %c0_3 = arith.constant 0 : index
    %7 = vector.load %arg2[%c0_2, %c0_3] : memref<16x32xf32, #tpu.memory_space<vmem>>, vector<16x32xf32>
    %cst = arith.constant dense<0.000000e+00> : vector<324x32xf32>
    %8 = tpu.matmul %6, %7, %cst {dimension_numbers = #tpu.dot_dimension_numbers<[1], [0], [0], [1], [0, 0, 1, 1], [], []>} : vector<324x16xf32>, vector<16x32xf32>, vector<324x32xf32> -> vector<324x32xf32>
    %c0_4 = arith.constant 0 : index
    %c0_5 = arith.constant 0 : index
    %c0_6 = arith.constant 0 : index
    %9 = vector.load %arg3[%c0_4, %c0_5, %c0_6] : memref<1x324x32xf32, #tpu.memory_space<vmem>>, vector<1x324x32xf32>
    %10 = vector.shape_cast %9 : vector<1x324x32xf32> to vector<324x32xf32>
    %11 = vector.shape_cast %8 : vector<324x32xf32> to vector<1x324x32xf32>
    tpu.vector_store %arg3[%c0_4, %c0_5, %c0_6], %11 {strides = array<i32>} : memref<1x324x32xf32, #tpu.memory_space<vmem>>, vector<1x324x32xf32>,
    %cst_7 = arith.constant dense<0.000000e+00> : vector<32xf32>
    %12 = vector.multi_reduction <add>, %8, %cst_7 [0] : vector<324x32xf32> to vector<32xf32>
    %13 = vector.shape_cast %12 : vector<32xf32> to vector<1x32xf32>
    %c0_8 = arith.constant 0 : index
    %c0_9 = arith.constant 0 : index
    %c0_10 = arith.constant 0 : index
    %14 = vector.load %arg4[%c0_8, %c0_9, %c0_10] : memref<1x1x32xf32, #tpu.memory_space<vmem>>, vector<1x1x32xf32>
    %15 = vector.shape_cast %14 : vector<1x1x32xf32> to vector<1x32xf32>
    %16 = vector.shape_cast %13 : vector<1x32xf32> to vector<1x1x32xf32>
    tpu.vector_store %arg4[%c0_8, %c0_9, %c0_10], %16 {strides = array<i32>} : memref<1x1x32xf32, #tpu.memory_space<vmem>>, vector<1x1x32xf32>,
    %17 = arith.mulf %8, %8 : vector<324x32xf32>
    %cst_11 = arith.constant dense<0.000000e+00> : vector<32xf32>
    %18 = vector.multi_reduction <add>, %17, %cst_11 [0] : vector<324x32xf32> to vector<32xf32>
    %19 = vector.shape_cast %18 : vector<32xf32> to vector<1x32xf32>
    %c0_12 = arith.constant 0 : index
    %c0_13 = arith.constant 0 : index
    %c0_14 = arith.constant 0 : index
    %20 = vector.load %arg5[%c0_12, %c0_13, %c0_14] : memref<1x1x32xf32, #tpu.memory_space<vmem>>, vector<1x1x32xf32>
    %21 = vector.shape_cast %20 : vector<1x1x32xf32> to vector<1x32xf32>
    %22 = vector.shape_cast %19 : vector<1x32xf32> to vector<1x1x32xf32>
    tpu.vector_store %arg5[%c0_12, %c0_13, %c0_14], %22 {strides = array<i32>} : memref<1x1x32xf32, #tpu.memory_space<vmem>>, vector<1x1x32xf32>,
    return
  }
  func.func @transform_0(%arg0: i32) -> (i32, i32, i32) {
    %c0_i32 = arith.constant 0 : i32
    %c0_i32_0 = arith.constant 0 : i32
    %c0_i32_1 = arith.constant 0 : i32
    return %arg0, %c0_i32, %c0_i32_0 : i32, i32, i32
  }
  func.func @transform_1(%arg0: i32) -> (i32, i32) {
    %c0_i32 = arith.constant 0 : i32
    %c0_i32_0 = arith.constant 0 : i32
    %c0_i32_1 = arith.constant 0 : i32
    return %c0_i32, %c0_i32_0 : i32, i32
  }
  func.func @transform_2(%arg0: i32) -> (i32, i32, i32) {
    %c0_i32 = arith.constant 0 : i32
    %c0_i32_0 = arith.constant 0 : i32
    %c0_i32_1 = arith.constant 0 : i32
    return %arg0, %c0_i32, %c0_i32_0 : i32, i32, i32
  }
  func.func @transform_3(%arg0: i32) -> (i32, i32, i32) {
    %c0_i32 = arith.constant 0 : i32
    %c0_i32_0 = arith.constant 0 : i32
    %c0_i32_1 = arith.constant 0 : i32
    return %arg0, %c0_i32, %c0_i32_0 : i32, i32, i32
  }
  func.func @transform_4(%arg0: i32) -> (i32, i32, i32) {
    %c0_i32 = arith.constant 0 : i32
    %c0_i32_0 = arith.constant 0 : i32
    %c0_i32_1 = arith.constant 0 : i32
    return %arg0, %c0_i32, %c0_i32_0 : i32, i32, i32
  }
}

module attributes {stable_mosaic.version = 11 : i64} {
  func.func @_bn_lrelu_kernel(%arg0: i32, %arg1: memref<1x324x32xf32, #tpu.memory_space<vmem>>, %arg2: memref<1x32xf32, #tpu.memory_space<vmem>>, %arg3: memref<1x32xf32, #tpu.memory_space<vmem>>, %arg4: memref<1x324x32xf32, #tpu.memory_space<vmem>>) attributes {dimension_semantics = [#tpu.dimension_semantics<parallel>], iteration_bounds = array<i64: 2>, scalar_prefetch = 0 : i64, scratch_operands = 0 : i64, tpu.core_type = #tpu.core_type<tc>, window_params = [{transform_indices = @transform_0, window_bounds = array<i64: 1, 324, 32>}, {pipeline_mode = #tpu.pipeline_mode<synchronous>, transform_indices = @transform_1, window_bounds = array<i64: 1, 32>}, {pipeline_mode = #tpu.pipeline_mode<synchronous>, transform_indices = @transform_2, window_bounds = array<i64: 1, 32>}, {transform_indices = @transform_3, window_bounds = array<i64: 1, 324, 32>}]} {
    %c0 = arith.constant 0 : index
    %c0_0 = arith.constant 0 : index
    %c0_1 = arith.constant 0 : index
    %0 = vector.load %arg1[%c0, %c0_0, %c0_1] : memref<1x324x32xf32, #tpu.memory_space<vmem>>, vector<1x324x32xf32>
    %c0_2 = arith.constant 0 : index
    %c0_3 = arith.constant 0 : index
    %1 = vector.load %arg2[%c0_2, %c0_3] : memref<1x32xf32, #tpu.memory_space<vmem>>, vector<1x32xf32>
    %2 = vector.shape_cast %1 : vector<1x32xf32> to vector<1x1x32xf32>
    %3 = vector.broadcast %2 : vector<1x1x32xf32> to vector<1x324x32xf32>
    %4 = arith.mulf %0, %3 : vector<1x324x32xf32>
    %c0_4 = arith.constant 0 : index
    %c0_5 = arith.constant 0 : index
    %5 = vector.load %arg3[%c0_4, %c0_5] : memref<1x32xf32, #tpu.memory_space<vmem>>, vector<1x32xf32>
    %6 = vector.shape_cast %5 : vector<1x32xf32> to vector<1x1x32xf32>
    %7 = vector.broadcast %6 : vector<1x1x32xf32> to vector<1x324x32xf32>
    %8 = arith.addf %4, %7 : vector<1x324x32xf32>
    %cst = arith.constant 0.000000e+00 : f32
    %9 = vector.broadcast %cst : f32 to vector<1x324x32xf32>
    %10 = arith.cmpf ogt, %8, %9 : vector<1x324x32xf32>
    %cst_6 = arith.constant 0.00999999977 : f32
    %11 = vector.broadcast %cst_6 : f32 to vector<1x324x32xf32>
    %12 = arith.mulf %11, %8 : vector<1x324x32xf32>
    %13 = arith.select %10, %8, %12 : vector<1x324x32xi1>, vector<1x324x32xf32>
    %c0_7 = arith.constant 0 : index
    %c0_8 = arith.constant 0 : index
    %c0_9 = arith.constant 0 : index
    %14 = vector.load %arg4[%c0_7, %c0_8, %c0_9] : memref<1x324x32xf32, #tpu.memory_space<vmem>>, vector<1x324x32xf32>
    tpu.vector_store %arg4[%c0_7, %c0_8, %c0_9], %13 {strides = array<i32>} : memref<1x324x32xf32, #tpu.memory_space<vmem>>, vector<1x324x32xf32>,
    return
  }
  func.func @transform_0(%arg0: i32) -> (i32, i32, i32) {
    %c0_i32 = arith.constant 0 : i32
    %c0_i32_0 = arith.constant 0 : i32
    %c0_i32_1 = arith.constant 0 : i32
    return %arg0, %c0_i32, %c0_i32_0 : i32, i32, i32
  }
  func.func @transform_1(%arg0: i32) -> (i32, i32) {
    %c0_i32 = arith.constant 0 : i32
    %c0_i32_0 = arith.constant 0 : i32
    %c0_i32_1 = arith.constant 0 : i32
    return %c0_i32, %c0_i32_0 : i32, i32
  }
  func.func @transform_2(%arg0: i32) -> (i32, i32) {
    %c0_i32 = arith.constant 0 : i32
    %c0_i32_0 = arith.constant 0 : i32
    %c0_i32_1 = arith.constant 0 : i32
    return %c0_i32, %c0_i32_0 : i32, i32
  }
  func.func @transform_3(%arg0: i32) -> (i32, i32, i32) {
    %c0_i32 = arith.constant 0 : i32
    %c0_i32_0 = arith.constant 0 : i32
    %c0_i32_1 = arith.constant 0 : i32
    return %arg0, %c0_i32, %c0_i32_0 : i32, i32, i32
  }
}

</mosaic_0001>

<llo_original>
// kernel: tile.19
$region0: #{tile.19}
  %s0 = inlined_call_operand.vmem [shape: f32[4,8], index: 0, kind: input, shape index: {}]
  %s1 = inlined_call_operand.vmem [shape: f32[1,32], index: 1, kind: output, shape index: {}]
  $region1: #{tile.19} parent=0
    #allocation0 [shape = 'u8[4096]{0}', space=vmem, size = 0x1000, scoped, tag = 'scoped mem for output reshape']
    #allocation1 [shape = 'u8[4096]{0}', space=vmem, size = 0x1000, scoped, tag = 'scoped mem for input reshape']
    %s3 = sshllo.u32 0, 4
    %v4 = vld [vmem:[%s0] sm:%s3]
    %5 = vst [vmem:[#allocation1] sm:%s3] %v4
    %v6 = vld [vmem:[#allocation1] sm:$0x1]
    %vm7 = vcmask 64512
    %8 = vst.msk [vmem:[#allocation0] sm:$0x1] %vm7, %v6
    %s9 = scalar_lea.vmem [#allocation1], 3
    %v10 = vld [vmem:[%s9] sm:$0x1]
    %11 = vrot.lane.b32.xlu0 %v10, 24
    %v12 = vpop.permute.xlu0 %11
    %vm13 = vcmask 261312
    %14 = vst.msk [vmem:[#allocation0] sm:$0x1] %vm13, %v12
    %s15 = scalar_lea.vmem [#allocation1], 2
    %v16 = vld [vmem:[%s15] sm:$0x1]
    %17 = vrot.lane.b32.xlu0 %v16, 16
    %v18 = vpop.permute.xlu0 %17
    %vm19 = vcmask 195712
    %20 = vst.msk [vmem:[#allocation0] sm:$0x1] %vm19, %v18
    %s21 = scalar_lea.vmem [#allocation1], 1
    %v22 = vld [vmem:[%s21] sm:$0x1]
    %23 = vrot.lane.b32.xlu0 %v22, 8
    %v24 = vpop.permute.xlu0 %23
    %vm25 = vcmask 130112
    %26 = vst.msk [vmem:[#allocation0] sm:$0x1] %vm25, %v24
    %s28 = sshllo.u32 0, 1
    %v30 = vld [vmem:[#allocation0] sm:%s28]
    %s31 = sshllo.u32 0, 1
    %32 = vst [vmem:[%s1] sm:%s31] %v30

// kernel: tile.18
$region0: #{tile.18}
  #allocation0 [shape = 's32[1]{0}', space=sflag, size = 0x4, scoped, tag = 'scoped memory for tile.18']
  %s0 = inlined_call_operand.vmem [shape: f32[8], index: 0, kind: input, shape index: {}]
  %s1 = inlined_call_operand.vmem [shape: f32[4,8], index: 1, kind: output, shape index: {}]
  // Predicated region
  $region2: #{tile.18} parent=0 // pred_check
    _
  $region3: #{tile.18} parent=0 // pred_check_branch
    %3 = sbr.rel (0) target = $region5
  $region4: #{tile.18} parent=0 // pred_region
    _
  $region5: #{tile.18} parent=0 // pred_fallthru
    _
  %v4 = vld [vmem:[%s0] ss:$0 sm:$0xff]
  %5 = vst [vmem:[%s1] sm:$0xf] %v4

// kernel: upsample_layer.3
$region0: #{upsample_layer.3}
  #allocation0 [shape = 'u32[]', space=smem, size = 0x4, offset = 0x4, fixed_abs, tag = 'smem constant byte address 0x4 - core index']
  #allocation1 [shape = 'u32[144,128]{1,0:T(1,128)}', space=vmem, size = 0x12000, scoped, tag = 'internal scratch']
  %s0 = inlined_call_operand.vmem [shape: f32[2,324,32], index: 0, kind: input, shape index: {}]
  %s1 = inlined_call_operand.vmem [shape: f32[1,32], index: 1, kind: input, shape index: {}]
  %s2 = inlined_call_operand.vmem [shape: f32[1,32], index: 2, kind: input, shape index: {}]
  %s3 = inlined_call_operand.vmem [shape: f32[2,324,32], index: 3, kind: output, shape index: {}]
  %s4 = sld [smem:[#allocation0]]
  $region45: #{upsample_layer.3} parent=0
    _
  %s6 = ssub.s32 1, %s4
  %s7 = scalar_select 0, %s6, %s4
  loop: start=0, step=1, limit=4
  $region2: #{upsample_layer.3} parent=0 // loop_pre_header
    _
  $region3: #{upsample_layer.3} parent=0 // loop_header
    %s9 = sphi 0, %s13
    %p10 = scmp.ge.s32.totalorder %s9, 4
    %s19 = sphi 0, %s21
    %s22 = sphi 0, %s19
    %s23 = sphi 0, %s22
    %s39 = sphi 0, %s23
    %s43 = sphi 0, %s43
    %s45 = sphi 0, %s43
    %s46 = sphi 0, %s45
    %s60 = sphi 0, %s46
    %s64 = sphi 0, %s64
    %s66 = sphi 0, %s64
    %s67 = sphi 0, %s66
    %s81 = sphi 0, %s67
    %s87 = sphi 0, %s89
    %s90 = sphi 0, %s87
    %s91 = sphi 0, %s90
    %s107 = sphi 0, %s91
  $region4: #{upsample_layer.3} parent=0 // loop_header_branch
    %12 = sbr.rel (%p10) target = $region8
  $region5: #{upsample_layer.3} parent=0 // loop_body
    %s14 = ssub.s32 %s9, 1
    %s15 = ssub.s32 %s9, 2
    %s16 = sadd.s32 %s9, 1
    %s17 = ssub.s32 %s9, %s16
    %p18 = scmp.eq.s32.totalorder %s17, 0
    %s20 = sadd.s32 %s19, 1
    %s21 = scalar_select %p18, %s19, %s20
    %p24 = pneg %p18
    %p25 = scmp.eq.s32.totalorder %s9, 1
    %p26 = por %p24, %p25
    %p27 = scmp.ne.s32.totalorder %s19, %s22
    %p28 = scmp.eq.s32.totalorder %s9, 0
    %p29 = por %p27, %p28
    %p30 = scmp.ne.s32.totalorder %s19, %s22
    %p31 = scmp.eq.s32.totalorder %s14, 1
    %p32 = por %p30, %p31
    %p33 = scmp.ne.s32.totalorder %s22, %s23
    %p34 = scmp.eq.s32.totalorder %s14, 0
    %p35 = por %p33, %p34
    %p36 = scmp.ne.s32.totalorder %s22, %s23
    %p37 = scmp.eq.s32.totalorder %s15, 1
    %p38 = por %p36, %p37
    %p40 = scmp.ne.s32.totalorder %s23, %s39
    %p41 = scmp.eq.s32.totalorder %s15, 0
    %p42 = por %p40, %p41
    %s44 = sadd.s32 %s43, 1
    %p47 = scmp.eq.s32.totalorder %s9, 1
    %p48 = scmp.ne.s32.totalorder %s43, %s45
    %p49 = scmp.eq.s32.totalorder %s9, 0
    %p50 = por %p48, %p49
    %p51 = scmp.ne.s32.totalorder %s43, %s45
    %p52 = scmp.eq.s32.totalorder %s14, 1
    %p53 = por %p51, %p52
    %p54 = scmp.ne.s32.totalorder %s45, %s46
    %p55 = scmp.eq.s32.totalorder %s14, 0
    %p56 = por %p54, %p55
    %p57 = scmp.ne.s32.totalorder %s45, %s46
    %p58 = scmp.eq.s32.totalorder %s15, 1
    %p59 = por %p57, %p58
    %p61 = scmp.ne.s32.totalorder %s46, %s60
    %p62 = scmp.eq.s32.totalorder %s15, 0
    %p63 = por %p61, %p62
    %s65 = sadd.s32 %s64, 1
    %p68 = scmp.eq.s32.totalorder %s9, 1
    %p69 = scmp.ne.s32.totalorder %s64, %s66
    %p70 = scmp.eq.s32.totalorder %s9, 0
    %p71 = por %p69, %p70
    %p72 = scmp.ne.s32.totalorder %s64, %s66
    %p73 = scmp.eq.s32.totalorder %s14, 1
    %p74 = por %p72, %p73
    %p75 = scmp.ne.s32.totalorder %s66, %s67
    %p76 = scmp.eq.s32.totalorder %s14, 0
    %p77 = por %p75, %p76
    %p78 = scmp.ne.s32.totalorder %s66, %s67
    %p79 = scmp.eq.s32.totalorder %s15, 1
    %p80 = por %p78, %p79
    %p82 = scmp.ne.s32.totalorder %s67, %s81
    %p83 = scmp.eq.s32.totalorder %s15, 0
    %p84 = por %p82, %p83
    %s85 = ssub.s32 %s9, %s16
    %p86 = scmp.eq.s32.totalorder %s85, 0
    %s88 = sadd.s32 %s87, 1
    %s89 = scalar_select %p86, %s87, %s88
    %p92 = pneg %p86
    %p93 = scmp.eq.s32.totalorder %s9, 1
    %p94 = por %p92, %p93
    %p95 = scmp.ne.s32.totalorder %s87, %s90
    %p96 = scmp.eq.s32.totalorder %s9, 0
    %p97 = por %p95, %p96
    %p98 = scmp.ne.s32.totalorder %s87, %s90
    %p99 = scmp.eq.s32.totalorder %s14, 1
    %p100 = por %p98, %p99
    %p101 = scmp.ne.s32.totalorder %s90, %s91
    %p102 = scmp.eq.s32.totalorder %s14, 0
    %p103 = por %p101, %p102
    %p104 = scmp.ne.s32.totalorder %s90, %s91
    %p105 = scmp.eq.s32.totalorder %s15, 1
    %p106 = por %p104, %p105
    %p108 = scmp.ne.s32.totalorder %s91, %s107
    %p109 = scmp.eq.s32.totalorder %s15, 0
    %p110 = por %p108, %p109
    %p111 = scmp.le.s32.totalorder 1, %s9
    %p112 = scmp.lt.s32.totalorder %s9, 3
    %p113 = pnand %p111, %p112
    %p114 = pneg %p113
    // Predicated region
    $region9: #{upsample_layer.3} parent=5 // pred_check
      _
    $region10: #{upsample_layer.3} parent=5 // pred_check_branch
      %116 = sbr.rel (%p113) target = $region12
    $region11: #{upsample_layer.3} parent=5 // pred_region
      %s117 = ssub.s32 %s9, 1
      // Predicated region
      $region13: #{upsample_layer.3} parent=11 // pred_check
        %p118 = pneg %p56
      $region14: #{upsample_layer.3} parent=11 // pred_check_branch
        %120 = sbr.rel (%p118) target = $region16
      $region15: #{upsample_layer.3} parent=11 // pred_region
        _
      $region16: #{upsample_layer.3} parent=11 // pred_fallthru
        _
      // Predicated region
      $region17: #{upsample_layer.3} parent=11 // pred_check
        %p121 = pneg %p77
      $region18: #{upsample_layer.3} parent=11 // pred_check_branch
        %123 = sbr.rel (%p121) target = $region20
      $region19: #{upsample_layer.3} parent=11 // pred_region
        _
      $region20: #{upsample_layer.3} parent=11 // pred_fallthru
        _
    $region12: #{upsample_layer.3} parent=5 // pred_fallthru
      _
    %p124 = scmp.lt.s32.totalorder %s9, 2
    // Predicated region
    $region21: #{upsample_layer.3} parent=5 // pred_check
      %p125 = pneg %p124
    $region22: #{upsample_layer.3} parent=5 // pred_check_branch
      %127 = sbr.rel (%p125) target = $region24
    $region23: #{upsample_layer.3} parent=5 // pred_region
      // Predicated region
      $region25: #{upsample_layer.3} parent=23 // pred_check
        %p128 = pneg %p29
      $region26: #{upsample_layer.3} parent=23 // pred_check_branch
        %130 = sbr.rel (%p128) target = $region28
      $region27: #{upsample_layer.3} parent=23 // pred_region
        %p131 = scmp.lt.s32.totalorder %s9, 1
        %s132 = scalar_select %p131, %s9, 1
        %s133 = smul.addr %s132, 41
        %s134 = smul.addr %s133, 8
        %s135 = scalar_lea.vmem %s0, %s134
      $region28: #{upsample_layer.3} parent=23 // pred_fallthru
        _
    $region24: #{upsample_layer.3} parent=5 // pred_fallthru
      _
    %p136 = scmp.le.s32.totalorder 1, %s9
    %p137 = scmp.lt.s32.totalorder %s9, 3
    %p138 = pnand %p136, %p137
    %p139 = pneg %p138
    // Predicated region
    $region29: #{upsample_layer.3} parent=5 // pred_check
      _
    $region30: #{upsample_layer.3} parent=5 // pred_check_branch
      %141 = sbr.rel (%p138) target = $region32
    $region31: #{upsample_layer.3} parent=5 // pred_region
      %s142 = ssub.s32 %s9, 1
      %p143 = scmp.lt.s32.totalorder %s14, 1
      %s144 = scalar_select %p143, %s14, 1
      %s145 = smul.addr %s144, 41
      %s146 = smul.addr %s145, 8
      %s147 = scalar_lea.vmem %s0, %s146
      %p148 = pneg %p35
      %p149 = pneg %p32
      %p150 = pneg %p56
      %p151 = pneg %p53
      %p152 = pneg %p77
      %p153 = pneg %p74
      %p154 = pneg %p103
      %p155 = pneg %p100
      %p156 = scmp.lt.s32.totalorder %s14, 1
      %s157 = scalar_select %p156, %s14, 1
      %s158 = smul.addr %s157, 41
      %s159 = smul.addr %s158, 8
      %s160 = scalar_lea.vmem %s3, %s159
      %p161 = scmp.lt.s32.totalorder %s14, 1
      %s162 = scalar_select %p161, %s14, 1
      %s163 = smul.addr %s162, 41
      %s164 = smul.addr %s163, 8
      %s165 = scalar_lea.vmem %s0, %s164
      %p166 = scmp.lt.s32.totalorder %s14, 1
      %s167 = scalar_select %p166, %s14, 1
      %s168 = smul.addr %s167, 41
      %s169 = smul.addr %s168, 8
      %s170 = scalar_lea.vmem %s3, %s169
      %v171 = vld [vmem:[%s165] sm:$0xff]
      %v172 = vld [vmem:[%s165 + $0x8] sm:$0xff]
      %v173 = vld [vmem:[%s165 + $0x10] sm:$0xff]
      %v174 = vld [vmem:[%s165 + $0x18] sm:$0xff]
      %v175 = vld [vmem:[%s165 + $0x20] sm:$0xff]
      %v176 = vld [vmem:[%s165 + $0x28] sm:$0xff]
      %v177 = vld [vmem:[%s165 + $0x30] sm:$0xff]
      %v178 = vld [vmem:[%s165 + $0x38] sm:$0xff]
      %v179 = vld [vmem:[%s165 + $0x40] sm:$0xff]
      %v180 = vld [vmem:[%s165 + $0x48] sm:$0xff]
      %v181 = vld [vmem:[%s165 + $0x50] sm:$0xff]
      %v182 = vld [vmem:[%s165 + $0x58] sm:$0xff]
      %v183 = vld [vmem:[%s165 + $0x60] sm:$0xff]
      %v184 = vld [vmem:[%s165 + $0x68] sm:$0xff]
      %v185 = vld [vmem:[%s165 + $0x70] sm:$0xff]
      %v186 = vld [vmem:[%s165 + $0x78] sm:$0xff]
      %v187 = vld [vmem:[%s165 + $0x80] sm:$0xff]
      %v188 = vld [vmem:[%s165 + $0x88] sm:$0xff]
      %v189 = vld [vmem:[%s165 + $0x90] sm:$0xff]
      %v190 = vld [vmem:[%s165 + $0x98] sm:$0xff]
      %v191 = vld [vmem:[%s165 + $0xa0] sm:$0xff]
      %v192 = vld [vmem:[%s165 + $0xa8] sm:$0xff]
      %v193 = vld [vmem:[%s165 + $0xb0] sm:$0xff]
      %v194 = vld [vmem:[%s165 + $0xb8] sm:$0xff]
      %v195 = vld [vmem:[%s165 + $0xc0] sm:$0xff]
      %v196 = vld [vmem:[%s165 + $0xc8] sm:$0xff]
      %v197 = vld [vmem:[%s165 + $0xd0] sm:$0xff]
      %v198 = vld [vmem:[%s165 + $0xd8] sm:$0xff]
      %v199 = vld [vmem:[%s165 + $0xe0] sm:$0xff]
      %v200 = vld [vmem:[%s165 + $0xe8] sm:$0xff]
      %v201 = vld [vmem:[%s165 + $0xf0] sm:$0xff]
      %v202 = vld [vmem:[%s165 + $0xf8] sm:$0xff]
      %v203 = vld [vmem:[%s165 + $0x100] sm:$0xff]
      %v204 = vld [vmem:[%s165 + $0x108] sm:$0xff]
      %v205 = vld [vmem:[%s165 + $0x110] sm:$0xff]
      %v206 = vld [vmem:[%s165 + $0x118] sm:$0xff]
      %v207 = vld [vmem:[%s165 + $0x120] sm:$0xff]
      %v208 = vld [vmem:[%s165 + $0x128] sm:$0xff]
      %v209 = vld [vmem:[%s165 + $0x130] sm:$0xff]
      %v210 = vld [vmem:[%s165 + $0x138] sm:$0xff]
      %v211 = vld [vmem:[%s165 + $0x140] sm:$0xf]
      %v212 = vld [vmem:[%s1] sm:$0x1]
      %v214 = vlaneseq
      %v215 = vshrl.u32 %v214, 7
      %v216 = vsub.s32 0, %v215
      %v217 = vrot.slane %v212, %v216
      %v219 = vmul.f32 %v171, %v217
      %v220 = vmul.f32 %v172, %v217
      %v221 = vmul.f32 %v173, %v217
      %v222 = vmul.f32 %v174, %v217
      %v223 = vmul.f32 %v175, %v217
      %v224 = vmul.f32 %v176, %v217
      %v225 = vmul.f32 %v177, %v217
      %v226 = vmul.f32 %v178, %v217
      %v227 = vmul.f32 %v179, %v217
      %v228 = vmul.f32 %v180, %v217
      %v229 = vmul.f32 %v181, %v217
      %v230 = vmul.f32 %v182, %v217
      %v231 = vmul.f32 %v183, %v217
      %v232 = vmul.f32 %v184, %v217
      %v233 = vmul.f32 %v185, %v217
      %v234 = vmul.f32 %v186, %v217
      %v235 = vmul.f32 %v187, %v217
      %v236 = vmul.f32 %v188, %v217
      %v237 = vmul.f32 %v189, %v217
      %v238 = vmul.f32 %v190, %v217
      %v239 = vmul.f32 %v191, %v217
      %v240 = vmul.f32 %v192, %v217
      %v241 = vmul.f32 %v193, %v217
      %v242 = vmul.f32 %v194, %v217
      %v243 = vmul.f32 %v195, %v217
      %v244 = vmul.f32 %v196, %v217
      %v245 = vmul.f32 %v197, %v217
      %v246 = vmul.f32 %v198, %v217
      %v247 = vmul.f32 %v199, %v217
      %v248 = vmul.f32 %v200, %v217
      %v249 = vmul.f32 %v201, %v217
      %v250 = vmul.f32 %v202, %v217
      %v251 = vmul.f32 %v203, %v217
      %v252 = vmul.f32 %v204, %v217
      %v253 = vmul.f32 %v205, %v217
      %v254 = vmul.f32 %v206, %v217
      %v255 = vmul.f32 %v207, %v217
      %v256 = vmul.f32 %v208, %v217
      %v257 = vmul.f32 %v209, %v217
      %v258 = vmul.f32 %v210, %v217
      %v259 = vmul.f32 %v211, %v217
      %v260 = vld [vmem:[%s2] sm:$0x1]
      %v262 = vlaneseq
      %v263 = vshrl.u32 %v262, 7
      %v264 = vsub.s32 0, %v263
      %v265 = vrot.slane %v260, %v264
      %v267 = vadd.f32 %v219, %v265
      %v268 = vadd.f32 %v220, %v265
      %v269 = vadd.f32 %v221, %v265
      %v270 = vadd.f32 %v222, %v265
      %v271 = vadd.f32 %v223, %v265
      %v272 = vadd.f32 %v224, %v265
      %v273 = vadd.f32 %v225, %v265
      %v274 = vadd.f32 %v226, %v265
      %v275 = vadd.f32 %v227, %v265
      %v276 = vadd.f32 %v228, %v265
      %v277 = vadd.f32 %v229, %v265
      %v278 = vadd.f32 %v230, %v265
      %v279 = vadd.f32 %v231, %v265
      %v280 = vadd.f32 %v232, %v265
      %v281 = vadd.f32 %v233, %v265
      %v282 = vadd.f32 %v234, %v265
      %v283 = vadd.f32 %v235, %v265
      %v284 = vadd.f32 %v236, %v265
      %v285 = vadd.f32 %v237, %v265
      %v286 = vadd.f32 %v238, %v265
      %v287 = vadd.f32 %v239, %v265
      %v288 = vadd.f32 %v240, %v265
      %v289 = vadd.f32 %v241, %v265
      %v290 = vadd.f32 %v242, %v265
      %v291 = vadd.f32 %v243, %v265
      %v292 = vadd.f32 %v244, %v265
      %v293 = vadd.f32 %v245, %v265
      %v294 = vadd.f32 %v246, %v265
      %v295 = vadd.f32 %v247, %v265
      %v296 = vadd.f32 %v248, %v265
      %v297 = vadd.f32 %v249, %v265
      %v298 = vadd.f32 %v250, %v265
      %v299 = vadd.f32 %v251, %v265
      %v300 = vadd.f32 %v252, %v265
      %v301 = vadd.f32 %v253, %v265
      %v302 = vadd.f32 %v254, %v265
      %v303 = vadd.f32 %v255, %v265
      %v304 = vadd.f32 %v256, %v265
      %v305 = vadd.f32 %v257, %v265
      %v306 = vadd.f32 %v258, %v265
      %v307 = vadd.f32 %v259, %v265
      %vm308 = vcmp.gt.f32.partialorder %v267, 0.0
      %vm309 = vcmp.gt.f32.partialorder %v268, 0.0
      %vm310 = vcmp.gt.f32.partialorder %v269, 0.0
      %vm311 = vcmp.gt.f32.partialorder %v270, 0.0
      %vm312 = vcmp.gt.f32.partialorder %v271, 0.0
      %vm313 = vcmp.gt.f32.partialorder %v272, 0.0
      %vm314 = vcmp.gt.f32.partialorder %v273, 0.0
      %vm315 = vcmp.gt.f32.partialorder %v274, 0.0
      %vm316 = vcmp.gt.f32.partialorder %v275, 0.0
      %vm317 = vcmp.gt.f32.partialorder %v276, 0.0
      %vm318 = vcmp.gt.f32.partialorder %v277, 0.0
      %vm319 = vcmp.gt.f32.partialorder %v278, 0.0
      %vm320 = vcmp.gt.f32.partialorder %v279, 0.0
      %vm321 = vcmp.gt.f32.partialorder %v280, 0.0
      %vm322 = vcmp.gt.f32.partialorder %v281, 0.0
      %vm323 = vcmp.gt.f32.partialorder %v282, 0.0
      %vm324 = vcmp.gt.f32.partialorder %v283, 0.0
      %vm325 = vcmp.gt.f32.partialorder %v284, 0.0
      %vm326 = vcmp.gt.f32.partialorder %v285, 0.0
      %vm327 = vcmp.gt.f32.partialorder %v286, 0.0
      %vm328 = vcmp.gt.f32.partialorder %v287, 0.0
      %vm329 = vcmp.gt.f32.partialorder %v288, 0.0
      %vm330 = vcmp.gt.f32.partialorder %v289, 0.0
      %vm331 = vcmp.gt.f32.partialorder %v290, 0.0
      %vm332 = vcmp.gt.f32.partialorder %v291, 0.0
      %vm333 = vcmp.gt.f32.partialorder %v292, 0.0
      %vm334 = vcmp.gt.f32.partialorder %v293, 0.0
      %vm335 = vcmp.gt.f32.partialorder %v294, 0.0
      %vm336 = vcmp.gt.f32.partialorder %v295, 0.0
      %vm337 = vcmp.gt.f32.partialorder %v296, 0.0
      %vm338 = vcmp.gt.f32.partialorder %v297, 0.0
      %vm339 = vcmp.gt.f32.partialorder %v298, 0.0
      %vm340 = vcmp.gt.f32.partialorder %v299, 0.0
      %vm341 = vcmp.gt.f32.partialorder %v300, 0.0
      %vm342 = vcmp.gt.f32.partialorder %v301, 0.0
      %vm343 = vcmp.gt.f32.partialorder %v302, 0.0
      %vm344 = vcmp.gt.f32.partialorder %v303, 0.0
      %vm345 = vcmp.gt.f32.partialorder %v304, 0.0
      %vm346 = vcmp.gt.f32.partialorder %v305, 0.0
      %vm347 = vcmp.gt.f32.partialorder %v306, 0.0
      %vm348 = vcmp.gt.f32.partialorder %v307, 0.0
      %v349 = vmul.f32 %v267, 0.01
      %v350 = vmul.f32 %v268, 0.01
      %v351 = vmul.f32 %v269, 0.01
      %v352 = vmul.f32 %v270, 0.01
      %v353 = vmul.f32 %v271, 0.01
      %v354 = vmul.f32 %v272, 0.01
      %v355 = vmul.f32 %v273, 0.01
      %v356 = vmul.f32 %v274, 0.01
      %v357 = vmul.f32 %v275, 0.01
      %v358 = vmul.f32 %v276, 0.01
      %v359 = vmul.f32 %v277, 0.01
      %v360 = vmul.f32 %v278, 0.01
      %v361 = vmul.f32 %v279, 0.01
      %v362 = vmul.f32 %v280, 0.01
      %v363 = vmul.f32 %v281, 0.01
      %v364 = vmul.f32 %v282, 0.01
      %v365 = vmul.f32 %v283, 0.01
      %v366 = vmul.f32 %v284, 0.01
      %v367 = vmul.f32 %v285, 0.01
      %v368 = vmul.f32 %v286, 0.01
      %v369 = vmul.f32 %v287, 0.01
      %v370 = vmul.f32 %v288, 0.01
      %v371 = vmul.f32 %v289, 0.01
      %v372 = vmul.f32 %v290, 0.01
      %v373 = vmul.f32 %v291, 0.01
      %v374 = vmul.f32 %v292, 0.01
      %v375 = vmul.f32 %v293, 0.01
      %v376 = vmul.f32 %v294, 0.01
      %v377 = vmul.f32 %v295, 0.01
      %v378 = vmul.f32 %v296, 0.01
      %v379 = vmul.f32 %v297, 0.01
      %v380 = vmul.f32 %v298, 0.01
      %v381 = vmul.f32 %v299, 0.01
      %v382 = vmul.f32 %v300, 0.01
      %v383 = vmul.f32 %v301, 0.01
      %v384 = vmul.f32 %v302, 0.01
      %v385 = vmul.f32 %v303, 0.01
      %v386 = vmul.f32 %v304, 0.01
      %v387 = vmul.f32 %v305, 0.01
      %v388 = vmul.f32 %v306, 0.01
      %v389 = vmul.f32 %v307, 0.01
      %v390 = vsel %vm308, %v267, %v349
      %v391 = vsel %vm309, %v268, %v350
      %v392 = vsel %vm310, %v269, %v351
      %v393 = vsel %vm311, %v270, %v352
      %v394 = vsel %vm312, %v271, %v353
      %v395 = vsel %vm313, %v272, %v354
      %v396 = vsel %vm314, %v273, %v355
      %v397 = vsel %vm315, %v274, %v356
      %v398 = vsel %vm316, %v275, %v357
      %v399 = vsel %vm317, %v276, %v358
      %v400 = vsel %vm318, %v277, %v359
      %v401 = vsel %vm319, %v278, %v360
      %v402 = vsel %vm320, %v279, %v361
      %v403 = vsel %vm321, %v280, %v362
      %v404 = vsel %vm322, %v281, %v363
      %v405 = vsel %vm323, %v282, %v364
      %v406 = vsel %vm324, %v283, %v365
      %v407 = vsel %vm325, %v284, %v366
      %v408 = vsel %vm326, %v285, %v367
      %v409 = vsel %vm327, %v286, %v368
      %v410 = vsel %vm328, %v287, %v369
      %v411 = vsel %vm329, %v288, %v370
      %v412 = vsel %vm330, %v289, %v371
      %v413 = vsel %vm331, %v290, %v372
      %v414 = vsel %vm332, %v291, %v373
      %v415 = vsel %vm333, %v292, %v374
      %v416 = vsel %vm334, %v293, %v375
      %v417 = vsel %vm335, %v294, %v376
      %v418 = vsel %vm336, %v295, %v377
      %v419 = vsel %vm337, %v296, %v378
      %v420 = vsel %vm338, %v297, %v379
      %v421 = vsel %vm339, %v298, %v380
      %v422 = vsel %vm340, %v299, %v381
      %v423 = vsel %vm341, %v300, %v382
      %v424 = vsel %vm342, %v301, %v383
      %v425 = vsel %vm343, %v302, %v384
      %v426 = vsel %vm344, %v303, %v385
      %v427 = vsel %vm345, %v304, %v386
      %v428 = vsel %vm346, %v305, %v387
      %v429 = vsel %vm347, %v306, %v388
      %v430 = vsel %vm348, %v307, %v389
      %vm431 = vcmask 261120
      %432 = vst.msk [vmem:[%s170] sm:$0xff] %vm431, %v390
      %433 = vst.msk [vmem:[%s170 + $0x8] sm:$0xff] %vm431, %v391
      %434 = vst.msk [vmem:[%s170 + $0x10] sm:$0xff] %vm431, %v392
      %435 = vst.msk [vmem:[%s170 + $0x18] sm:$0xff] %vm431, %v393
      %436 = vst.msk [vmem:[%s170 + $0x20] sm:$0xff] %vm431, %v394
      %437 = vst.msk [vmem:[%s170 + $0x28] sm:$0xff] %vm431, %v395
      %438 = vst.msk [vmem:[%s170 + $0x30] sm:$0xff] %vm431, %v396
      %439 = vst.msk [vmem:[%s170 + $0x38] sm:$0xff] %vm431, %v397
      %440 = vst.msk [vmem:[%s170 + $0x40] sm:$0xff] %vm431, %v398
      %441 = vst.msk [vmem:[%s170 + $0x48] sm:$0xff] %vm431, %v399
      %442 = vst.msk [vmem:[%s170 + $0x50] sm:$0xff] %vm431, %v400
      %443 = vst.msk [vmem:[%s170 + $0x58] sm:$0xff] %vm431, %v401
      %444 = vst.msk [vmem:[%s170 + $0x60] sm:$0xff] %vm431, %v402
      %445 = vst.msk [vmem:[%s170 + $0x68] sm:$0xff] %vm431, %v403
      %446 = vst.msk [vmem:[%s170 + $0x70] sm:$0xff] %vm431, %v404
      %447 = vst.msk [vmem:[%s170 + $0x78] sm:$0xff] %vm431, %v405
      %448 = vst.msk [vmem:[%s170 + $0x80] sm:$0xff] %vm431, %v406
      %449 = vst.msk [vmem:[%s170 + $0x88] sm:$0xff] %vm431, %v407
      %450 = vst.msk [vmem:[%s170 + $0x90] sm:$0xff] %vm431, %v408
      %451 = vst.msk [vmem:[%s170 + $0x98] sm:$0xff] %vm431, %v409
      %452 = vst.msk [vmem:[%s170 + $0xa0] sm:$0xff] %vm431, %v410
      %453 = vst.msk [vmem:[%s170 + $0xa8] sm:$0xff] %vm431, %v411
      %454 = vst.msk [vmem:[%s170 + $0xb0] sm:$0xff] %vm431, %v412
      %455 = vst.msk [vmem:[%s170 + $0xb8] sm:$0xff] %vm431, %v413
      %456 = vst.msk [vmem:[%s170 + $0xc0] sm:$0xff] %vm431, %v414
      %457 = vst.msk [vmem:[%s170 + $0xc8] sm:$0xff] %vm431, %v415
      %458 = vst.msk [vmem:[%s170 + $0xd0] sm:$0xff] %vm431, %v416
      %459 = vst.msk [vmem:[%s170 + $0xd8] sm:$0xff] %vm431, %v417
      %460 = vst.msk [vmem:[%s170 + $0xe0] sm:$0xff] %vm431, %v418
      %461 = vst.msk [vmem:[%s170 + $0xe8] sm:$0xff] %vm431, %v419
      %462 = vst.msk [vmem:[%s170 + $0xf0] sm:$0xff] %vm431, %v420
      %463 = vst.msk [vmem:[%s170 + $0xf8] sm:$0xff] %vm431, %v421
      %464 = vst.msk [vmem:[%s170 + $0x100] sm:$0xff] %vm431, %v422
      %465 = vst.msk [vmem:[%s170 + $0x108] sm:$0xff] %vm431, %v423
      %466 = vst.msk [vmem:[%s170 + $0x110] sm:$0xff] %vm431, %v424
      %467 = vst.msk [vmem:[%s170 + $0x118] sm:$0xff] %vm431, %v425
      %468 = vst.msk [vmem:[%s170 + $0x120] sm:$0xff] %vm431, %v426
      %469 = vst.msk [vmem:[%s170 + $0x128] sm:$0xff] %vm431, %v427
      %470 = vst.msk [vmem:[%s170 + $0x130] sm:$0xff] %vm431, %v428
      %471 = vst.msk [vmem:[%s170 + $0x138] sm:$0xff] %vm431, %v429
      %vm472 = vcmask 257024
      %473 = vst.msk [vmem:[%s170 + $0x140] sm:$0xf] %vm472, %v430
      %p474 = scmp.lt.s32.totalorder %s14, 1
      %s475 = scalar_select %p474, %s14, 1
      %s476 = smul.addr %s475, 41
      %s477 = smul.addr %s476, 8
      %s478 = scalar_lea.vmem %s3, %s477
      // Predicated region
      $region33: #{upsample_layer.3} parent=31 // pred_check
        %p479 = pneg %p100
      $region34: #{upsample_layer.3} parent=31 // pred_check_branch
        %481 = sbr.rel (%p479) target = $region36
      $region35: #{upsample_layer.3} parent=31 // pred_region
        _
      $region36: #{upsample_layer.3} parent=31 // pred_fallthru
        _
    $region32: #{upsample_layer.3} parent=5 // pred_fallthru
      _
    %p482 = scmp.le.s32.totalorder 2, %s9
    // Predicated region
    $region37: #{upsample_layer.3} parent=5 // pred_check
      %p483 = pneg %p482
    $region38: #{upsample_layer.3} parent=5 // pred_check_branch
      %485 = sbr.rel (%p483) target = $region40
    $region39: #{upsample_layer.3} parent=5 // pred_region
      %s486 = ssub.s32 %s9, 2
      // Predicated region
      $region41: #{upsample_layer.3} parent=39 // pred_check
        %p487 = pneg %p106
      $region42: #{upsample_layer.3} parent=39 // pred_check_branch
        %489 = sbr.rel (%p487) target = $region44
      $region43: #{upsample_layer.3} parent=39 // pred_region
        %p490 = scmp.lt.s32.totalorder %s15, 1
        %s491 = scalar_select %p490, %s15, 1
        %s492 = smul.addr %s491, 41
        %s493 = smul.addr %s492, 8
        %s494 = scalar_lea.vmem %s3, %s493
      $region44: #{upsample_layer.3} parent=39 // pred_fallthru
        _
    $region40: #{upsample_layer.3} parent=5 // pred_fallthru
      _
  $region6: #{upsample_layer.3} parent=0 // loop_footer
    %s13 = sadd.s32 1, %s9
  $region7: #{upsample_layer.3} parent=0 // loop_footer_branch
    %8 = sbr.rel target = $region3
  $region8: #{upsample_layer.3} parent=0 // loop_exit
    _

// kernel: upsample_layer.2
$region0: #{upsample_layer.2}
  #allocation0 [shape = 'u32[]', space=smem, size = 0x4, offset = 0x4, fixed_abs, tag = 'smem constant byte address 0x4 - core index']
  #allocation1 [shape = 'u32[144,128]{1,0:T(1,128)}', space=vmem, size = 0x12000, scoped, tag = 'internal scratch']
  %s0 = inlined_call_operand.vmem [shape: f32[2,343,4], index: 0, kind: input, shape index: {}]
  %s1 = inlined_call_operand.vmem [shape: f32[16,32], index: 1, kind: input, shape index: {}]
  %s2 = inlined_call_operand.vmem [shape: f32[2,324,32], index: 2, kind: output, shape index: {0}]
  %s3 = inlined_call_operand.vmem [shape: f32[2,1,32], index: 3, kind: output, shape index: {1}]
  %s4 = inlined_call_operand.vmem [shape: f32[2,1,32], index: 4, kind: output, shape index: {2}]
  %5 = xla_tuple %s2, %s3, %s4
  %s6 = sld [smem:[#allocation0]]
  $region57: #{upsample_layer.2} parent=0
    _
  %s8 = ssub.s32 1, %s6
  %s9 = scalar_select 0, %s8, %s6
  loop: start=0, step=1, limit=4
  $region2: #{upsample_layer.2} parent=0 // loop_pre_header
    _
  $region3: #{upsample_layer.2} parent=0 // loop_header
    %s11 = sphi 0, %s15
    %p12 = scmp.ge.s32.totalorder %s11, 4
    %s21 = sphi 0, %s23
    %s24 = sphi 0, %s21
    %s25 = sphi 0, %s24
    %s41 = sphi 0, %s25
    %s45 = sphi 0, %s45
    %s47 = sphi 0, %s45
    %s48 = sphi 0, %s47
    %s62 = sphi 0, %s48
    %s68 = sphi 0, %s70
    %s71 = sphi 0, %s68
    %s72 = sphi 0, %s71
    %s88 = sphi 0, %s72
    %s94 = sphi 0, %s96
    %s97 = sphi 0, %s94
    %s98 = sphi 0, %s97
    %s114 = sphi 0, %s98
    %s120 = sphi 0, %s122
    %s123 = sphi 0, %s120
    %s124 = sphi 0, %s123
    %s140 = sphi 0, %s124
  $region4: #{upsample_layer.2} parent=0 // loop_header_branch
    %14 = sbr.rel (%p12) target = $region8
  $region5: #{upsample_layer.2} parent=0 // loop_body
    %s16 = ssub.s32 %s11, 1
    %s17 = ssub.s32 %s11, 2
    %s18 = sadd.s32 %s11, 1
    %s19 = ssub.s32 %s11, %s18
    %p20 = scmp.eq.s32.totalorder %s19, 0
    %s22 = sadd.s32 %s21, 1
    %s23 = scalar_select %p20, %s21, %s22
    %p26 = pneg %p20
    %p27 = scmp.eq.s32.totalorder %s11, 1
    %p28 = por %p26, %p27
    %p29 = scmp.ne.s32.totalorder %s21, %s24
    %p30 = scmp.eq.s32.totalorder %s11, 0
    %p31 = por %p29, %p30
    %p32 = scmp.ne.s32.totalorder %s21, %s24
    %p33 = scmp.eq.s32.totalorder %s16, 1
    %p34 = por %p32, %p33
    %p35 = scmp.ne.s32.totalorder %s24, %s25
    %p36 = scmp.eq.s32.totalorder %s16, 0
    %p37 = por %p35, %p36
    %p38 = scmp.ne.s32.totalorder %s24, %s25
    %p39 = scmp.eq.s32.totalorder %s17, 1
    %p40 = por %p38, %p39
    %p42 = scmp.ne.s32.totalorder %s25, %s41
    %p43 = scmp.eq.s32.totalorder %s17, 0
    %p44 = por %p42, %p43
    %s46 = sadd.s32 %s45, 1
    %p49 = scmp.eq.s32.totalorder %s11, 1
    %p50 = scmp.ne.s32.totalorder %s45, %s47
    %p51 = scmp.eq.s32.totalorder %s11, 0
    %p52 = por %p50, %p51
    %p53 = scmp.ne.s32.totalorder %s45, %s47
    %p54 = scmp.eq.s32.totalorder %s16, 1
    %p55 = por %p53, %p54
    %p56 = scmp.ne.s32.totalorder %s47, %s48
    %p57 = scmp.eq.s32.totalorder %s16, 0
    %p58 = por %p56, %p57
    %p59 = scmp.ne.s32.totalorder %s47, %s48
    %p60 = scmp.eq.s32.totalorder %s17, 1
    %p61 = por %p59, %p60
    %p63 = scmp.ne.s32.totalorder %s48, %s62
    %p64 = scmp.eq.s32.totalorder %s17, 0
    %p65 = por %p63, %p64
    %s66 = ssub.s32 %s11, %s18
    %p67 = scmp.eq.s32.totalorder %s66, 0
    %s69 = sadd.s32 %s68, 1
    %s70 = scalar_select %p67, %s68, %s69
    %p73 = pneg %p67
    %p74 = scmp.eq.s32.totalorder %s11, 1
    %p75 = por %p73, %p74
    %p76 = scmp.ne.s32.totalorder %s68, %s71
    %p77 = scmp.eq.s32.totalorder %s11, 0
    %p78 = por %p76, %p77
    %p79 = scmp.ne.s32.totalorder %s68, %s71
    %p80 = scmp.eq.s32.totalorder %s16, 1
    %p81 = por %p79, %p80
    %p82 = scmp.ne.s32.totalorder %s71, %s72
    %p83 = scmp.eq.s32.totalorder %s16, 0
    %p84 = por %p82, %p83
    %p85 = scmp.ne.s32.totalorder %s71, %s72
    %p86 = scmp.eq.s32.totalorder %s17, 1
    %p87 = por %p85, %p86
    %p89 = scmp.ne.s32.totalorder %s72, %s88
    %p90 = scmp.eq.s32.totalorder %s17, 0
    %p91 = por %p89, %p90
    %s92 = ssub.s32 %s11, %s18
    %p93 = scmp.eq.s32.totalorder %s92, 0
    %s95 = sadd.s32 %s94, 1
    %s96 = scalar_select %p93, %s94, %s95
    %p99 = pneg %p93
    %p100 = scmp.eq.s32.totalorder %s11, 1
    %p101 = por %p99, %p100
    %p102 = scmp.ne.s32.totalorder %s94, %s97
    %p103 = scmp.eq.s32.totalorder %s11, 0
    %p104 = por %p102, %p103
    %p105 = scmp.ne.s32.totalorder %s94, %s97
    %p106 = scmp.eq.s32.totalorder %s16, 1
    %p107 = por %p105, %p106
    %p108 = scmp.ne.s32.totalorder %s97, %s98
    %p109 = scmp.eq.s32.totalorder %s16, 0
    %p110 = por %p108, %p109
    %p111 = scmp.ne.s32.totalorder %s97, %s98
    %p112 = scmp.eq.s32.totalorder %s17, 1
    %p113 = por %p111, %p112
    %p115 = scmp.ne.s32.totalorder %s98, %s114
    %p116 = scmp.eq.s32.totalorder %s17, 0
    %p117 = por %p115, %p116
    %s118 = ssub.s32 %s11, %s18
    %p119 = scmp.eq.s32.totalorder %s118, 0
    %s121 = sadd.s32 %s120, 1
    %s122 = scalar_select %p119, %s120, %s121
    %p125 = pneg %p119
    %p126 = scmp.eq.s32.totalorder %s11, 1
    %p127 = por %p125, %p126
    %p128 = scmp.ne.s32.totalorder %s120, %s123
    %p129 = scmp.eq.s32.totalorder %s11, 0
    %p130 = por %p128, %p129
    %p131 = scmp.ne.s32.totalorder %s120, %s123
    %p132 = scmp.eq.s32.totalorder %s16, 1
    %p133 = por %p131, %p132
    %p134 = scmp.ne.s32.totalorder %s123, %s124
    %p135 = scmp.eq.s32.totalorder %s16, 0
    %p136 = por %p134, %p135
    %p137 = scmp.ne.s32.totalorder %s123, %s124
    %p138 = scmp.eq.s32.totalorder %s17, 1
    %p139 = por %p137, %p138
    %p141 = scmp.ne.s32.totalorder %s124, %s140
    %p142 = scmp.eq.s32.totalorder %s17, 0
    %p143 = por %p141, %p142
    %p144 = scmp.le.s32.totalorder 1, %s11
    %p145 = scmp.lt.s32.totalorder %s11, 3
    %p146 = pnand %p144, %p145
    %p147 = pneg %p146
    // Predicated region
    $region9: #{upsample_layer.2} parent=5 // pred_check
      _
    $region10: #{upsample_layer.2} parent=5 // pred_check_branch
      %149 = sbr.rel (%p146) target = $region12
    $region11: #{upsample_layer.2} parent=5 // pred_region
      %s150 = ssub.s32 %s11, 1
      // Predicated region
      $region13: #{upsample_layer.2} parent=11 // pred_check
        %p151 = pneg %p58
      $region14: #{upsample_layer.2} parent=11 // pred_check_branch
        %153 = sbr.rel (%p151) target = $region16
      $region15: #{upsample_layer.2} parent=11 // pred_region
        _
      $region16: #{upsample_layer.2} parent=11 // pred_fallthru
        _
    $region12: #{upsample_layer.2} parent=5 // pred_fallthru
      _
    %p154 = scmp.lt.s32.totalorder %s11, 2
    // Predicated region
    $region17: #{upsample_layer.2} parent=5 // pred_check
      %p155 = pneg %p154
    $region18: #{upsample_layer.2} parent=5 // pred_check_branch
      %157 = sbr.rel (%p155) target = $region20
    $region19: #{upsample_layer.2} parent=5 // pred_region
      // Predicated region
      $region21: #{upsample_layer.2} parent=19 // pred_check
        %p158 = pneg %p31
      $region22: #{upsample_layer.2} parent=19 // pred_check_branch
        %160 = sbr.rel (%p158) target = $region24
      $region23: #{upsample_layer.2} parent=19 // pred_region
        %p161 = scmp.lt.s32.totalorder %s11, 1
        %s162 = scalar_select %p161, %s11, 1
        %s163 = smul.addr %s162, 43
        %s164 = smul.addr %s163, 8
        %s165 = scalar_lea.vmem %s0, %s164
      $region24: #{upsample_layer.2} parent=19 // pred_fallthru
        _
    $region20: #{upsample_layer.2} parent=5 // pred_fallthru
      _
    %p166 = scmp.le.s32.totalorder 1, %s11
    %p167 = scmp.lt.s32.totalorder %s11, 3
    %p168 = pnand %p166, %p167
    %p169 = pneg %p168
    // Predicated region
    $region25: #{upsample_layer.2} parent=5 // pred_check
      _
    $region26: #{upsample_layer.2} parent=5 // pred_check_branch
      %171 = sbr.rel (%p168) target = $region28
    $region27: #{upsample_layer.2} parent=5 // pred_region
      %s172 = ssub.s32 %s11, 1
      %p173 = scmp.lt.s32.totalorder %s16, 1
      %s174 = scalar_select %p173, %s16, 1
      %s175 = smul.addr %s174, 43
      %s176 = smul.addr %s175, 8
      %s177 = scalar_lea.vmem %s0, %s176
      %p178 = pneg %p37
      %p179 = pneg %p34
      %p180 = pneg %p58
      %p181 = pneg %p55
      %p182 = pneg %p84
      %p183 = pneg %p81
      %p184 = scmp.lt.s32.totalorder %s16, 1
      %s185 = scalar_select %p184, %s16, 1
      %s186 = smul.addr %s185, 41
      %s187 = smul.addr %s186, 8
      %s188 = scalar_lea.vmem %s2, %s187
      %p189 = pneg %p110
      %p190 = pneg %p107
      %p191 = scmp.lt.s32.totalorder %s16, 1
      %s192 = scalar_select %p191, %s16, 1
      %s193 = scalar_lea.vmem %s3, %s192
      %p194 = pneg %p136
      %p195 = pneg %p133
      %p196 = scmp.lt.s32.totalorder %s16, 1
      %s197 = scalar_select %p196, %s16, 1
      %s198 = scalar_lea.vmem %s4, %s197
      %p199 = scmp.lt.s32.totalorder %s16, 1
      %s200 = scalar_select %p199, %s16, 1
      %s201 = smul.addr %s200, 43
      %s202 = smul.addr %s201, 8
      %s203 = scalar_lea.vmem %s0, %s202
      %p204 = scmp.lt.s32.totalorder %s16, 1
      %s205 = scalar_select %p204, %s16, 1
      %s206 = smul.addr %s205, 41
      %s207 = smul.addr %s206, 8
      %s208 = scalar_lea.vmem %s2, %s207
      %p209 = scmp.lt.s32.totalorder %s16, 1
      %s210 = scalar_select %p209, %s16, 1
      %s211 = scalar_lea.vmem %s3, %s210
      %p212 = scmp.lt.s32.totalorder %s16, 1
      %s213 = scalar_select %p212, %s16, 1
      %s214 = scalar_lea.vmem %s4, %s213
      %v215 = vld [vmem:[%s203] sm:$0xff]
      %v216 = vld [vmem:[%s203 + $0x8] sm:$0xff]
      %v217 = vld [vmem:[%s203 + $0x10] sm:$0xff]
      %v218 = vld [vmem:[%s203 + $0x18] sm:$0xff]
      %v219 = vld [vmem:[%s203 + $0x20] sm:$0xff]
      %v220 = vld [vmem:[%s203 + $0x28] sm:$0xff]
      %v221 = vld [vmem:[%s203 + $0x30] sm:$0xff]
      %v222 = vld [vmem:[%s203 + $0x38] sm:$0xff]
      %v223 = vld [vmem:[%s203 + $0x40] sm:$0xff]
      %v224 = vld [vmem:[%s203 + $0x48] sm:$0xff]
      %v225 = vld [vmem:[%s203 + $0x50] sm:$0xff]
      %v226 = vld [vmem:[%s203 + $0x58] sm:$0xff]
      %v227 = vld [vmem:[%s203 + $0x60] sm:$0xff]
      %v228 = vld [vmem:[%s203 + $0x68] sm:$0xff]
      %v229 = vld [vmem:[%s203 + $0x70] sm:$0xff]
      %v230 = vld [vmem:[%s203 + $0x78] sm:$0xff]
      %v231 = vld [vmem:[%s203 + $0x80] sm:$0xff]
      %v232 = vld [vmem:[%s203 + $0x88] sm:$0xff]
      %v233 = vld [vmem:[%s203 + $0x90] sm:$0xff]
      %v234 = vld [vmem:[%s203 + $0x98] sm:$0xff]
      %v235 = vld [vmem:[%s203 + $0xa0] sm:$0xff]
      %v236 = vld [vmem:[%s203 + $0xa8] sm:$0xff]
      %v237 = vld [vmem:[%s203 + $0xb0] sm:$0xff]
      %v238 = vld [vmem:[%s203 + $0xb8] sm:$0xff]
      %v239 = vld [vmem:[%s203 + $0xc0] sm:$0xff]
      %v240 = vld [vmem:[%s203 + $0xc8] sm:$0xff]
      %v241 = vld [vmem:[%s203 + $0xd0] sm:$0xff]
      %v242 = vld [vmem:[%s203 + $0xd8] sm:$0xff]
      %v243 = vld [vmem:[%s203 + $0xe0] sm:$0xff]
      %v244 = vld [vmem:[%s203 + $0xe8] sm:$0xff]
      %v245 = vld [vmem:[%s203 + $0xf0] sm:$0xff]
      %v246 = vld [vmem:[%s203 + $0xf8] sm:$0xff]
      %v247 = vld [vmem:[%s203 + $0x100] sm:$0xff]
      %v248 = vld [vmem:[%s203 + $0x108] sm:$0xff]
      %v249 = vld [vmem:[%s203 + $0x110] sm:$0xff]
      %v250 = vld [vmem:[%s203 + $0x118] sm:$0xff]
      %v251 = vld [vmem:[%s203 + $0x120] sm:$0xff]
      %v252 = vld [vmem:[%s203 + $0x128] sm:$0xff]
      %v253 = vld [vmem:[%s203 + $0x130] sm:$0xff]
      %v254 = vld [vmem:[%s203 + $0x138] sm:$0xff]
      %v255 = vld [vmem:[%s203 + $0x140] sm:$0xff]
      %v256 = vld [vmem:[%s203 + $0x148] sm:$0xff]
      %v257 = vld [vmem:[%s203 + $0x150] sm:$0x7f]
      %vm299 = vcmask 1040384
      %v300 = vrot.slane %v217, 7
      %v301 = vrot.slane %v218, 7
      %v302 = vsel %vm299, %v300, %v301
      %v303 = vrot.slane %v219, 7
      %v304 = vsel %vm299, %v301, %v303
      %v305 = vrot.slane %v220, 7
      %v306 = vsel %vm299, %v303, %v305
      %v307 = vrot.slane %v221, 7
      %v308 = vsel %vm299, %v305, %v307
      %v309 = vrot.slane %v222, 7
      %v310 = vsel %vm299, %v307, %v309
      %v311 = vrot.slane %v223, 7
      %v312 = vsel %vm299, %v309, %v311
      %v313 = vrot.slane %v224, 7
      %v314 = vsel %vm299, %v311, %v313
      %v315 = vrot.slane %v225, 7
      %v316 = vsel %vm299, %v313, %v315
      %v317 = vrot.slane %v226, 7
      %v318 = vsel %vm299, %v315, %v317
      %v319 = vrot.slane %v227, 7
      %v320 = vsel %vm299, %v317, %v319
      %v321 = vrot.slane %v228, 7
      %v322 = vsel %vm299, %v319, %v321
      %v323 = vrot.slane %v229, 7
      %v324 = vsel %vm299, %v321, %v323
      %v325 = vrot.slane %v230, 7
      %v326 = vsel %vm299, %v323, %v325
      %v327 = vrot.slane %v231, 7
      %v328 = vsel %vm299, %v325, %v327
      %v329 = vrot.slane %v232, 7
      %v330 = vsel %vm299, %v327, %v329
      %v331 = vrot.slane %v233, 7
      %v332 = vsel %vm299, %v329, %v331
      %v333 = vrot.slane %v234, 7
      %v334 = vsel %vm299, %v331, %v333
      %v335 = vrot.slane %v235, 7
      %v336 = vsel %vm299, %v333, %v335
      %v337 = vrot.slane %v236, 7
      %v338 = vsel %vm299, %v335, %v337
      %v339 = vrot.slane %v237, 7
      %v340 = vsel %vm299, %v337, %v339
      %v341 = vrot.slane %v238, 7
      %v342 = vsel %vm299, %v339, %v341
      %v343 = vrot.slane %v239, 7
      %v344 = vsel %vm299, %v341, %v343
      %v345 = vrot.slane %v240, 7
      %v346 = vsel %vm299, %v343, %v345
      %v347 = vrot.slane %v241, 7
      %v348 = vsel %vm299, %v345, %v347
      %v349 = vrot.slane %v242, 7
      %v350 = vsel %vm299, %v347, %v349
      %v351 = vrot.slane %v243, 7
      %v352 = vsel %vm299, %v349, %v351
      %v353 = vrot.slane %v244, 7
      %v354 = vsel %vm299, %v351, %v353
      %v355 = vrot.slane %v245, 7
      %v356 = vsel %vm299, %v353, %v355
      %v357 = vrot.slane %v246, 7
      %v358 = vsel %vm299, %v355, %v357
      %v359 = vrot.slane %v247, 7
      %v360 = vsel %vm299, %v357, %v359
      %v361 = vrot.slane %v248, 7
      %v362 = vsel %vm299, %v359, %v361
      %v363 = vrot.slane %v249, 7
      %v364 = vsel %vm299, %v361, %v363
      %v365 = vrot.slane %v250, 7
      %v366 = vsel %vm299, %v363, %v365
      %v367 = vrot.slane %v251, 7
      %v368 = vsel %vm299, %v365, %v367
      %v369 = vrot.slane %v252, 7
      %v370 = vsel %vm299, %v367, %v369
      %v371 = vrot.slane %v253, 7
      %v372 = vsel %vm299, %v369, %v371
      %v373 = vrot.slane %v254, 7
      %v374 = vsel %vm299, %v371, %v373
      %v375 = vrot.slane %v255, 7
      %v376 = vsel %vm299, %v373, %v375
      %v377 = vrot.slane %v256, 7
      %v378 = vsel %vm299, %v375, %v377
      %v379 = vrot.slane %v257, 7
      %v380 = vsel %vm299, %v377, %v379
      %381 = vrot.lane.b32.xlu0 %v300, 4
      %v382 = vpop.permute.xlu0 %381
      %383 = vrot.lane.b32.xlu0 %v302, 4
      %v384 = vpop.permute.xlu0 %383
      %385 = vrot.lane.b32.xlu0 %v304, 4
      %v386 = vpop.permute.xlu0 %385
      %387 = vrot.lane.b32.xlu0 %v306, 4
      %v388 = vpop.permute.xlu0 %387
      %389 = vrot.lane.b32.xlu0 %v308, 4
      %v390 = vpop.permute.xlu0 %389
      %391 = vrot.lane.b32.xlu0 %v310, 4
      %v392 = vpop.permute.xlu0 %391
      %393 = vrot.lane.b32.xlu0 %v312, 4
      %v394 = vpop.permute.xlu0 %393
      %395 = vrot.lane.b32.xlu0 %v314, 4
      %v396 = vpop.permute.xlu0 %395
      %397 = vrot.lane.b32.xlu0 %v316, 4
      %v398 = vpop.permute.xlu0 %397
      %399 = vrot.lane.b32.xlu0 %v318, 4
      %v400 = vpop.permute.xlu0 %399
      %401 = vrot.lane.b32.xlu0 %v320, 4
      %v402 = vpop.permute.xlu0 %401
      %403 = vrot.lane.b32.xlu0 %v322, 4
      %v404 = vpop.permute.xlu0 %403
      %405 = vrot.lane.b32.xlu0 %v324, 4
      %v406 = vpop.permute.xlu0 %405
      %407 = vrot.lane.b32.xlu0 %v326, 4
      %v408 = vpop.permute.xlu0 %407
      %409 = vrot.lane.b32.xlu0 %v328, 4
      %v410 = vpop.permute.xlu0 %409
      %411 = vrot.lane.b32.xlu0 %v330, 4
      %v412 = vpop.permute.xlu0 %411
      %413 = vrot.lane.b32.xlu0 %v332, 4
      %v414 = vpop.permute.xlu0 %413
      %415 = vrot.lane.b32.xlu0 %v334, 4
      %v416 = vpop.permute.xlu0 %415
      %417 = vrot.lane.b32.xlu0 %v336, 4
      %v418 = vpop.permute.xlu0 %417
      %419 = vrot.lane.b32.xlu0 %v338, 4
      %v420 = vpop.permute.xlu0 %419
      %421 = vrot.lane.b32.xlu0 %v340, 4
      %v422 = vpop.permute.xlu0 %421
      %423 = vrot.lane.b32.xlu0 %v342, 4
      %v424 = vpop.permute.xlu0 %423
      %425 = vrot.lane.b32.xlu0 %v344, 4
      %v426 = vpop.permute.xlu0 %425
      %427 = vrot.lane.b32.xlu0 %v346, 4
      %v428 = vpop.permute.xlu0 %427
      %429 = vrot.lane.b32.xlu0 %v348, 4
      %v430 = vpop.permute.xlu0 %429
      %431 = vrot.lane.b32.xlu0 %v350, 4
      %v432 = vpop.permute.xlu0 %431
      %433 = vrot.lane.b32.xlu0 %v352, 4
      %v434 = vpop.permute.xlu0 %433
      %435 = vrot.lane.b32.xlu0 %v354, 4
      %v436 = vpop.permute.xlu0 %435
      %437 = vrot.lane.b32.xlu0 %v356, 4
      %v438 = vpop.permute.xlu0 %437
      %439 = vrot.lane.b32.xlu0 %v358, 4
      %v440 = vpop.permute.xlu0 %439
      %441 = vrot.lane.b32.xlu0 %v360, 4
      %v442 = vpop.permute.xlu0 %441
      %443 = vrot.lane.b32.xlu0 %v362, 4
      %v444 = vpop.permute.xlu0 %443
      %445 = vrot.lane.b32.xlu0 %v364, 4
      %v446 = vpop.permute.xlu0 %445
      %447 = vrot.lane.b32.xlu0 %v366, 4
      %v448 = vpop.permute.xlu0 %447
      %449 = vrot.lane.b32.xlu0 %v368, 4
      %v450 = vpop.permute.xlu0 %449
      %451 = vrot.lane.b32.xlu0 %v370, 4
      %v452 = vpop.permute.xlu0 %451
      %453 = vrot.lane.b32.xlu0 %v372, 4
      %v454 = vpop.permute.xlu0 %453
      %455 = vrot.lane.b32.xlu0 %v374, 4
      %v456 = vpop.permute.xlu0 %455
      %457 = vrot.lane.b32.xlu0 %v376, 4
      %v458 = vpop.permute.xlu0 %457
      %459 = vrot.lane.b32.xlu0 %v378, 4
      %v460 = vpop.permute.xlu0 %459
      %461 = vrot.lane.b32.xlu0 %v380, 4
      %v462 = vpop.permute.xlu0 %461
      %vm506 = vcmask 1041408
      %v507 = vrot.slane %v215, 6
      %v508 = vrot.slane %v216, 6
      %v509 = vsel %vm506, %v507, %v508
      %v510 = vrot.slane %v217, 6
      %v511 = vsel %vm506, %v508, %v510
      %v512 = vrot.slane %v218, 6
      %v513 = vsel %vm506, %v510, %v512
      %v514 = vrot.slane %v219, 6
      %v515 = vsel %vm506, %v512, %v514
      %v516 = vrot.slane %v220, 6
      %v517 = vsel %vm506, %v514, %v516
      %v518 = vrot.slane %v221, 6
      %v519 = vsel %vm506, %v516, %v518
      %v520 = vrot.slane %v222, 6
      %v521 = vsel %vm506, %v518, %v520
      %v522 = vrot.slane %v223, 6
      %v523 = vsel %vm506, %v520, %v522
      %v524 = vrot.slane %v224, 6
      %v525 = vsel %vm506, %v522, %v524
      %v526 = vrot.slane %v225, 6
      %v527 = vsel %vm506, %v524, %v526
      %v528 = vrot.slane %v226, 6
      %v529 = vsel %vm506, %v526, %v528
      %v530 = vrot.slane %v227, 6
      %v531 = vsel %vm506, %v528, %v530
      %v532 = vrot.slane %v228, 6
      %v533 = vsel %vm506, %v530, %v532
      %v534 = vrot.slane %v229, 6
      %v535 = vsel %vm506, %v532, %v534
      %v536 = vrot.slane %v230, 6
      %v537 = vsel %vm506, %v534, %v536
      %v538 = vrot.slane %v231, 6
      %v539 = vsel %vm506, %v536, %v538
      %v540 = vrot.slane %v232, 6
      %v541 = vsel %vm506, %v538, %v540
      %v542 = vrot.slane %v233, 6
      %v543 = vsel %vm506, %v540, %v542
      %v544 = vrot.slane %v234, 6
      %v545 = vsel %vm506, %v542, %v544
      %v546 = vrot.slane %v235, 6
      %v547 = vsel %vm506, %v544, %v546
      %v548 = vrot.slane %v236, 6
      %v549 = vsel %vm506, %v546, %v548
      %v550 = vrot.slane %v237, 6
      %v551 = vsel %vm506, %v548, %v550
      %v552 = vrot.slane %v238, 6
      %v553 = vsel %vm506, %v550, %v552
      %v554 = vrot.slane %v239, 6
      %v555 = vsel %vm506, %v552, %v554
      %v556 = vrot.slane %v240, 6
      %v557 = vsel %vm506, %v554, %v556
      %v558 = vrot.slane %v241, 6
      %v559 = vsel %vm506, %v556, %v558
      %v560 = vrot.slane %v242, 6
      %v561 = vsel %vm506, %v558, %v560
      %v562 = vrot.slane %v243, 6
      %v563 = vsel %vm506, %v560, %v562
      %v564 = vrot.slane %v244, 6
      %v565 = vsel %vm506, %v562, %v564
      %v566 = vrot.slane %v245, 6
      %v567 = vsel %vm506, %v564, %v566
      %v568 = vrot.slane %v246, 6
      %v569 = vsel %vm506, %v566, %v568
      %v570 = vrot.slane %v247, 6
      %v571 = vsel %vm506, %v568, %v570
      %v572 = vrot.slane %v248, 6
      %v573 = vsel %vm506, %v570, %v572
      %v574 = vrot.slane %v249, 6
      %v575 = vsel %vm506, %v572, %v574
      %v576 = vrot.slane %v250, 6
      %v577 = vsel %vm506, %v574, %v576
      %v578 = vrot.slane %v251, 6
      %v579 = vsel %vm506, %v576, %v578
      %v580 = vrot.slane %v252, 6
      %v581 = vsel %vm506, %v578, %v580
      %v582 = vrot.slane %v253, 6
      %v583 = vsel %vm506, %v580, %v582
      %v584 = vrot.slane %v254, 6
      %v585 = vsel %vm506, %v582, %v584
      %v586 = vrot.slane %v255, 6
      %v587 = vsel %vm506, %v584, %v586
      %588 = vrot.lane.b32.xlu0 %v507, 8
      %v589 = vpop.permute.xlu0 %588
      %590 = vrot.lane.b32.xlu0 %v509, 8
      %v591 = vpop.permute.xlu0 %590
      %592 = vrot.lane.b32.xlu0 %v511, 8
      %v593 = vpop.permute.xlu0 %592
      %594 = vrot.lane.b32.xlu0 %v513, 8
      %v595 = vpop.permute.xlu0 %594
      %596 = vrot.lane.b32.xlu0 %v515, 8
      %v597 = vpop.permute.xlu0 %596
      %598 = vrot.lane.b32.xlu0 %v517, 8
      %v599 = vpop.permute.xlu0 %598
      %600 = vrot.lane.b32.xlu0 %v519, 8
      %v601 = vpop.permute.xlu0 %600
      %602 = vrot.lane.b32.xlu0 %v521, 8
      %v603 = vpop.permute.xlu0 %602
      %604 = vrot.lane.b32.xlu0 %v523, 8
      %v605 = vpop.permute.xlu0 %604
      %606 = vrot.lane.b32.xlu0 %v525, 8
      %v607 = vpop.permute.xlu0 %606
      %608 = vrot.lane.b32.xlu0 %v527, 8
      %v609 = vpop.permute.xlu0 %608
      %610 = vrot.lane.b32.xlu0 %v529, 8
      %v611 = vpop.permute.xlu0 %610
      %612 = vrot.lane.b32.xlu0 %v531, 8
      %v613 = vpop.permute.xlu0 %612
      %614 = vrot.lane.b32.xlu0 %v533, 8
      %v615 = vpop.permute.xlu0 %614
      %616 = vrot.lane.b32.xlu0 %v535, 8
      %v617 = vpop.permute.xlu0 %616
      %618 = vrot.lane.b32.xlu0 %v537, 8
      %v619 = vpop.permute.xlu0 %618
      %620 = vrot.lane.b32.xlu0 %v539, 8
      %v621 = vpop.permute.xlu0 %620
      %622 = vrot.lane.b32.xlu0 %v541, 8
      %v623 = vpop.permute.xlu0 %622
      %624 = vrot.lane.b32.xlu0 %v543, 8
      %v625 = vpop.permute.xlu0 %624
      %626 = vrot.lane.b32.xlu0 %v545, 8
      %v627 = vpop.permute.xlu0 %626
      %628 = vrot.lane.b32.xlu0 %v547, 8
      %v629 = vpop.permute.xlu0 %628
      %630 = vrot.lane.b32.xlu0 %v549, 8
      %v631 = vpop.permute.xlu0 %630
      %632 = vrot.lane.b32.xlu0 %v551, 8
      %v633 = vpop.permute.xlu0 %632
      %634 = vrot.lane.b32.xlu0 %v553, 8
      %v635 = vpop.permute.xlu0 %634
      %636 = vrot.lane.b32.xlu0 %v555, 8
      %v637 = vpop.permute.xlu0 %636
      %638 = vrot.lane.b32.xlu0 %v557, 8
      %v639 = vpop.permute.xlu0 %638
      %640 = vrot.lane.b32.xlu0 %v559, 8
      %v641 = vpop.permute.xlu0 %640
      %642 = vrot.lane.b32.xlu0 %v561, 8
      %v643 = vpop.permute.xlu0 %642
      %644 = vrot.lane.b32.xlu0 %v563, 8
      %v645 = vpop.permute.xlu0 %644
      %646 = vrot.lane.b32.xlu0 %v565, 8
      %v647 = vpop.permute.xlu0 %646
      %648 = vrot.lane.b32.xlu0 %v567, 8
      %v649 = vpop.permute.xlu0 %648
      %650 = vrot.lane.b32.xlu0 %v569, 8
      %v651 = vpop.permute.xlu0 %650
      %652 = vrot.lane.b32.xlu0 %v571, 8
      %v653 = vpop.permute.xlu0 %652
      %654 = vrot.lane.b32.xlu0 %v573, 8
      %v655 = vpop.permute.xlu0 %654
      %656 = vrot.lane.b32.xlu0 %v575, 8
      %v657 = vpop.permute.xlu0 %656
      %658 = vrot.lane.b32.xlu0 %v577, 8
      %v659 = vpop.permute.xlu0 %658
      %660 = vrot.lane.b32.xlu0 %v579, 8
      %v661 = vpop.permute.xlu0 %660
      %662 = vrot.lane.b32.xlu0 %v581, 8
      %v663 = vpop.permute.xlu0 %662
      %664 = vrot.lane.b32.xlu0 %v583, 8
      %v665 = vpop.permute.xlu0 %664
      %666 = vrot.lane.b32.xlu0 %v585, 8
      %v667 = vpop.permute.xlu0 %666
      %668 = vrot.lane.b32.xlu0 %v587, 8
      %v669 = vpop.permute.xlu0 %668
      %vm711 = vcmask 1042432
      %v712 = vrot.slane %v215, 5
      %v713 = vrot.slane %v216, 5
      %v714 = vsel %vm711, %v712, %v713
      %v715 = vrot.slane %v217, 5
      %v716 = vsel %vm711, %v713, %v715
      %v717 = vrot.slane %v218, 5
      %v718 = vsel %vm711, %v715, %v717
      %v719 = vrot.slane %v219, 5
      %v720 = vsel %vm711, %v717, %v719
      %v721 = vrot.slane %v220, 5
      %v722 = vsel %vm711, %v719, %v721
      %v723 = vrot.slane %v221, 5
      %v724 = vsel %vm711, %v721, %v723
      %v725 = vrot.slane %v222, 5
      %v726 = vsel %vm711, %v723, %v725
      %v727 = vrot.slane %v223, 5
      %v728 = vsel %vm711, %v725, %v727
      %v729 = vrot.slane %v224, 5
      %v730 = vsel %vm711, %v727, %v729
      %v731 = vrot.slane %v225, 5
      %v732 = vsel %vm711, %v729, %v731
      %v733 = vrot.slane %v226, 5
      %v734 = vsel %vm711, %v731, %v733
      %v735 = vrot.slane %v227, 5
      %v736 = vsel %vm711, %v733, %v735
      %v737 = vrot.slane %v228, 5
      %v738 = vsel %vm711, %v735, %v737
      %v739 = vrot.slane %v229, 5
      %v740 = vsel %vm711, %v737, %v739
      %v741 = vrot.slane %v230, 5
      %v742 = vsel %vm711, %v739, %v741
      %v743 = vrot.slane %v231, 5
      %v744 = vsel %vm711, %v741, %v743
      %v745 = vrot.slane %v232, 5
      %v746 = vsel %vm711, %v743, %v745
      %v747 = vrot.slane %v233, 5
      %v748 = vsel %vm711, %v745, %v747
      %v749 = vrot.slane %v234, 5
      %v750 = vsel %vm711, %v747, %v749
      %v751 = vrot.slane %v235, 5
      %v752 = vsel %vm711, %v749, %v751
      %v753 = vrot.slane %v236, 5
      %v754 = vsel %vm711, %v751, %v753
      %v755 = vrot.slane %v237, 5
      %v756 = vsel %vm711, %v753, %v755
      %v757 = vrot.slane %v238, 5
      %v758 = vsel %vm711, %v755, %v757
      %v759 = vrot.slane %v239, 5
      %v760 = vsel %vm711, %v757, %v759
      %v761 = vrot.slane %v240, 5
      %v762 = vsel %vm711, %v759, %v761
      %v763 = vrot.slane %v241, 5
      %v764 = vsel %vm711, %v761, %v763
      %v765 = vrot.slane %v242, 5
      %v766 = vsel %vm711, %v763, %v765
      %v767 = vrot.slane %v243, 5
      %v768 = vsel %vm711, %v765, %v767
      %v769 = vrot.slane %v244, 5
      %v770 = vsel %vm711, %v767, %v769
      %v771 = vrot.slane %v245, 5
      %v772 = vsel %vm711, %v769, %v771
      %v773 = vrot.slane %v246, 5
      %v774 = vsel %vm711, %v771, %v773
      %v775 = vrot.slane %v247, 5
      %v776 = vsel %vm711, %v773, %v775
      %v777 = vrot.slane %v248, 5
      %v778 = vsel %vm711, %v775, %v777
      %v779 = vrot.slane %v249, 5
      %v780 = vsel %vm711, %v777, %v779
      %v781 = vrot.slane %v250, 5
      %v782 = vsel %vm711, %v779, %v781
      %v783 = vrot.slane %v251, 5
      %v784 = vsel %vm711, %v781, %v783
      %v785 = vrot.slane %v252, 5
      %v786 = vsel %vm711, %v783, %v785
      %v787 = vrot.slane %v253, 5
      %v788 = vsel %vm711, %v785, %v787
      %v789 = vrot.slane %v254, 5
      %v790 = vsel %vm711, %v787, %v789
      %v791 = vrot.slane %v255, 5
      %v792 = vsel %vm711, %v789, %v791
      %793 = vrot.lane.b32.xlu0 %v712, 12
      %v794 = vpop.permute.xlu0 %793
      %795 = vrot.lane.b32.xlu0 %v714, 12
      %v796 = vpop.permute.xlu0 %795
      %797 = vrot.lane.b32.xlu0 %v716, 12
      %v798 = vpop.permute.xlu0 %797
      %799 = vrot.lane.b32.xlu0 %v718, 12
      %v800 = vpop.permute.xlu0 %799
      %801 = vrot.lane.b32.xlu0 %v720, 12
      %v802 = vpop.permute.xlu0 %801
      %803 = vrot.lane.b32.xlu0 %v722, 12
      %v804 = vpop.permute.xlu0 %803
      %805 = vrot.lane.b32.xlu0 %v724, 12
      %v806 = vpop.permute.xlu0 %805
      %807 = vrot.lane.b32.xlu0 %v726, 12
      %v808 = vpop.permute.xlu0 %807
      %809 = vrot.lane.b32.xlu0 %v728, 12
      %v810 = vpop.permute.xlu0 %809
      %811 = vrot.lane.b32.xlu0 %v730, 12
      %v812 = vpop.permute.xlu0 %811
      %813 = vrot.lane.b32.xlu0 %v732, 12
      %v814 = vpop.permute.xlu0 %813
      %815 = vrot.lane.b32.xlu0 %v734, 12
      %v816 = vpop.permute.xlu0 %815
      %817 = vrot.lane.b32.xlu0 %v736, 12
      %v818 = vpop.permute.xlu0 %817
      %819 = vrot.lane.b32.xlu0 %v738, 12
      %v820 = vpop.permute.xlu0 %819
      %821 = vrot.lane.b32.xlu0 %v740, 12
      %v822 = vpop.permute.xlu0 %821
      %823 = vrot.lane.b32.xlu0 %v742, 12
      %v824 = vpop.permute.xlu0 %823
      %825 = vrot.lane.b32.xlu0 %v744, 12
      %v826 = vpop.permute.xlu0 %825
      %827 = vrot.lane.b32.xlu0 %v746, 12
      %v828 = vpop.permute.xlu0 %827
      %829 = vrot.lane.b32.xlu0 %v748, 12
      %v830 = vpop.permute.xlu0 %829
      %831 = vrot.lane.b32.xlu0 %v750, 12
      %v832 = vpop.permute.xlu0 %831
      %833 = vrot.lane.b32.xlu0 %v752, 12
      %v834 = vpop.permute.xlu0 %833
      %835 = vrot.lane.b32.xlu0 %v754, 12
      %v836 = vpop.permute.xlu0 %835
      %837 = vrot.lane.b32.xlu0 %v756, 12
      %v838 = vpop.permute.xlu0 %837
      %839 = vrot.lane.b32.xlu0 %v758, 12
      %v840 = vpop.permute.xlu0 %839
      %841 = vrot.lane.b32.xlu0 %v760, 12
      %v842 = vpop.permute.xlu0 %841
      %843 = vrot.lane.b32.xlu0 %v762, 12
      %v844 = vpop.permute.xlu0 %843
      %845 = vrot.lane.b32.xlu0 %v764, 12
      %v846 = vpop.permute.xlu0 %845
      %847 = vrot.lane.b32.xlu0 %v766, 12
      %v848 = vpop.permute.xlu0 %847
      %849 = vrot.lane.b32.xlu0 %v768, 12
      %v850 = vpop.permute.xlu0 %849
      %851 = vrot.lane.b32.xlu0 %v770, 12
      %v852 = vpop.permute.xlu0 %851
      %853 = vrot.lane.b32.xlu0 %v772, 12
      %v854 = vpop.permute.xlu0 %853
      %855 = vrot.lane.b32.xlu0 %v774, 12
      %v856 = vpop.permute.xlu0 %855
      %857 = vrot.lane.b32.xlu0 %v776, 12
      %v858 = vpop.permute.xlu0 %857
      %859 = vrot.lane.b32.xlu0 %v778, 12
      %v860 = vpop.permute.xlu0 %859
      %861 = vrot.lane.b32.xlu0 %v780, 12
      %v862 = vpop.permute.xlu0 %861
      %863 = vrot.lane.b32.xlu0 %v782, 12
      %v864 = vpop.permute.xlu0 %863
      %865 = vrot.lane.b32.xlu0 %v784, 12
      %v866 = vpop.permute.xlu0 %865
      %867 = vrot.lane.b32.xlu0 %v786, 12
      %v868 = vpop.permute.xlu0 %867
      %869 = vrot.lane.b32.xlu0 %v788, 12
      %v870 = vpop.permute.xlu0 %869
      %871 = vrot.lane.b32.xlu0 %v790, 12
      %v872 = vpop.permute.xlu0 %871
      %873 = vrot.lane.b32.xlu0 %v792, 12
      %v874 = vpop.permute.xlu0 %873
      %vm916 = vcmask 31744
      %v917 = vsel %vm916, %v217, %v382
      %v918 = vsel %vm916, %v218, %v384
      %v919 = vsel %vm916, %v219, %v386
      %v920 = vsel %vm916, %v220, %v388
      %v921 = vsel %vm916, %v221, %v390
      %v922 = vsel %vm916, %v222, %v392
      %v923 = vsel %vm916, %v223, %v394
      %v924 = vsel %vm916, %v224, %v396
      %v925 = vsel %vm916, %v225, %v398
      %v926 = vsel %vm916, %v226, %v400
      %v927 = vsel %vm916, %v227, %v402
      %v928 = vsel %vm916, %v228, %v404
      %v929 = vsel %vm916, %v229, %v406
      %v930 = vsel %vm916, %v230, %v408
      %v931 = vsel %vm916, %v231, %v410
      %v932 = vsel %vm916, %v232, %v412
      %v933 = vsel %vm916, %v233, %v414
      %v934 = vsel %vm916, %v234, %v416
      %v935 = vsel %vm916, %v235, %v418
      %v936 = vsel %vm916, %v236, %v420
      %v937 = vsel %vm916, %v237, %v422
      %v938 = vsel %vm916, %v238, %v424
      %v939 = vsel %vm916, %v239, %v426
      %v940 = vsel %vm916, %v240, %v428
      %v941 = vsel %vm916, %v241, %v430
      %v942 = vsel %vm916, %v242, %v432
      %v943 = vsel %vm916, %v243, %v434
      %v944 = vsel %vm916, %v244, %v436
      %v945 = vsel %vm916, %v245, %v438
      %v946 = vsel %vm916, %v246, %v440
      %v947 = vsel %vm916, %v247, %v442
      %v948 = vsel %vm916, %v248, %v444
      %v949 = vsel %vm916, %v249, %v446
      %v950 = vsel %vm916, %v250, %v448
      %v951 = vsel %vm916, %v251, %v450
      %v952 = vsel %vm916, %v252, %v452
      %v953 = vsel %vm916, %v253, %v454
      %v954 = vsel %vm916, %v254, %v456
      %v955 = vsel %vm916, %v255, %v458
      %v956 = vsel %vm916, %v256, %v460
      %v957 = vsel %vm916, %v257, %v462
      %vm958 = vcmask 64512
      %v959 = vsel %vm958, %v917, %v589
      %v960 = vsel %vm958, %v918, %v591
      %v961 = vsel %vm958, %v919, %v593
      %v962 = vsel %vm958, %v920, %v595
      %v963 = vsel %vm958, %v921, %v597
      %v964 = vsel %vm958, %v922, %v599
      %v965 = vsel %vm958, %v923, %v601
      %v966 = vsel %vm958, %v924, %v603
      %v967 = vsel %vm958, %v925, %v605
      %v968 = vsel %vm958, %v926, %v607
      %v969 = vsel %vm958, %v927, %v609
      %v970 = vsel %vm958, %v928, %v611
      %v971 = vsel %vm958, %v929, %v613
      %v972 = vsel %vm958, %v930, %v615
      %v973 = vsel %vm958, %v931, %v617
      %v974 = vsel %vm958, %v932, %v619
      %v975 = vsel %vm958, %v933, %v621
      %v976 = vsel %vm958, %v934, %v623
      %v977 = vsel %vm958, %v935, %v625
      %v978 = vsel %vm958, %v936, %v627
      %v979 = vsel %vm958, %v937, %v629
      %v980 = vsel %vm958, %v938, %v631
      %v981 = vsel %vm958, %v939, %v633
      %v982 = vsel %vm958, %v940, %v635
      %v983 = vsel %vm958, %v941, %v637
      %v984 = vsel %vm958, %v942, %v639
      %v985 = vsel %vm958, %v943, %v641
      %v986 = vsel %vm958, %v944, %v643
      %v987 = vsel %vm958, %v945, %v645
      %v988 = vsel %vm958, %v946, %v647
      %v989 = vsel %vm958, %v947, %v649
      %v990 = vsel %vm958, %v948, %v651
      %v991 = vsel %vm958, %v949, %v653
      %v992 = vsel %vm958, %v950, %v655
      %v993 = vsel %vm958, %v951, %v657
      %v994 = vsel %vm958, %v952, %v659
      %v995 = vsel %vm958, %v953, %v661
      %v996 = vsel %vm958, %v954, %v663
      %v997 = vsel %vm958, %v955, %v665
      %v998 = vsel %vm958, %v956, %v667
      %v999 = vsel %vm958, %v957, %v669
      %vm1000 = vcmask 97280
      %v1001 = vsel %vm1000, %v959, %v794
      %v1002 = vsel %vm1000, %v960, %v796
      %v1003 = vsel %vm1000, %v961, %v798
      %v1004 = vsel %vm1000, %v962, %v800
      %v1005 = vsel %vm1000, %v963, %v802
      %v1006 = vsel %vm1000, %v964, %v804
      %v1007 = vsel %vm1000, %v965, %v806
      %v1008 = vsel %vm1000, %v966, %v808
      %v1009 = vsel %vm1000, %v967, %v810
      %v1010 = vsel %vm1000, %v968, %v812
      %v1011 = vsel %vm1000, %v969, %v814
      %v1012 = vsel %vm1000, %v970, %v816
      %v1013 = vsel %vm1000, %v971, %v818
      %v1014 = vsel %vm1000, %v972, %v820
      %v1015 = vsel %vm1000, %v973, %v822
      %v1016 = vsel %vm1000, %v974, %v824
      %v1017 = vsel %vm1000, %v975, %v826
      %v1018 = vsel %vm1000, %v976, %v828
      %v1019 = vsel %vm1000, %v977, %v830
      %v1020 = vsel %vm1000, %v978, %v832
      %v1021 = vsel %vm1000, %v979, %v834
      %v1022 = vsel %vm1000, %v980, %v836
      %v1023 = vsel %vm1000, %v981, %v838
      %v1024 = vsel %vm1000, %v982, %v840
      %v1025 = vsel %vm1000, %v983, %v842
      %v1026 = vsel %vm1000, %v984, %v844
      %v1027 = vsel %vm1000, %v985, %v846
      %v1028 = vsel %vm1000, %v986, %v848
      %v1029 = vsel %vm1000, %v987, %v850
      %v1030 = vsel %vm1000, %v988, %v852
      %v1031 = vsel %vm1000, %v989, %v854
      %v1032 = vsel %vm1000, %v990, %v856
      %v1033 = vsel %vm1000, %v991, %v858
      %v1034 = vsel %vm1000, %v992, %v860
      %v1035 = vsel %vm1000, %v993, %v862
      %v1036 = vsel %vm1000, %v994, %v864
      %v1037 = vsel %vm1000, %v995, %v866
      %v1038 = vsel %vm1000, %v996, %v868
      %v1039 = vsel %vm1000, %v997, %v870
      %v1040 = vsel %vm1000, %v998, %v872
      %v1041 = vsel %vm1000, %v999, %v874
      %v1042 = vld [vmem:[%s1] sm:$0xff]
      %v1043 = vld [vmem:[%s1 + $0x8] sm:$0xff]
      %vm1085 = vcmask 1044480
      %v1086 = vrot.slane %v1001, 3
      %v1087 = vrot.slane %v1002, 3
      %v1088 = vsel %vm1085, %v1086, %v1087
      %v1089 = vrot.slane %v1003, 3
      %v1090 = vsel %vm1085, %v1087, %v1089
      %v1091 = vrot.slane %v1004, 3
      %v1092 = vsel %vm1085, %v1089, %v1091
      %v1093 = vrot.slane %v1005, 3
      %v1094 = vsel %vm1085, %v1091, %v1093
      %v1095 = vrot.slane %v1006, 3
      %v1096 = vsel %vm1085, %v1093, %v1095
      %v1097 = vrot.slane %v1007, 3
      %v1098 = vsel %vm1085, %v1095, %v1097
      %v1099 = vrot.slane %v1008, 3
      %v1100 = vsel %vm1085, %v1097, %v1099
      %v1101 = vrot.slane %v1009, 3
      %v1102 = vsel %vm1085, %v1099, %v1101
      %v1103 = vrot.slane %v1010, 3
      %v1104 = vsel %vm1085, %v1101, %v1103
      %v1105 = vrot.slane %v1011, 3
      %v1106 = vsel %vm1085, %v1103, %v1105
      %v1107 = vrot.slane %v1012, 3
      %v1108 = vsel %vm1085, %v1105, %v1107
      %v1109 = vrot.slane %v1013, 3
      %v1110 = vsel %vm1085, %v1107, %v1109
      %v1111 = vrot.slane %v1014, 3
      %v1112 = vsel %vm1085, %v1109, %v1111
      %v1113 = vrot.slane %v1015, 3
      %v1114 = vsel %vm1085, %v1111, %v1113
      %v1115 = vrot.slane %v1016, 3
      %v1116 = vsel %vm1085, %v1113, %v1115
      %v1117 = vrot.slane %v1017, 3
      %v1118 = vsel %vm1085, %v1115, %v1117
      %v1119 = vrot.slane %v1018, 3
      %v1120 = vsel %vm1085, %v1117, %v1119
      %v1121 = vrot.slane %v1019, 3
      %v1122 = vsel %vm1085, %v1119, %v1121
      %v1123 = vrot.slane %v1020, 3
      %v1124 = vsel %vm1085, %v1121, %v1123
      %v1125 = vrot.slane %v1021, 3
      %v1126 = vsel %vm1085, %v1123, %v1125
      %v1127 = vrot.slane %v1022, 3
      %v1128 = vsel %vm1085, %v1125, %v1127
      %v1129 = vrot.slane %v1023, 3
      %v1130 = vsel %vm1085, %v1127, %v1129
      %v1131 = vrot.slane %v1024, 3
      %v1132 = vsel %vm1085, %v1129, %v1131
      %v1133 = vrot.slane %v1025, 3
      %v1134 = vsel %vm1085, %v1131, %v1133
      %v1135 = vrot.slane %v1026, 3
      %v1136 = vsel %vm1085, %v1133, %v1135
      %v1137 = vrot.slane %v1027, 3
      %v1138 = vsel %vm1085, %v1135, %v1137
      %v1139 = vrot.slane %v1028, 3
      %v1140 = vsel %vm1085, %v1137, %v1139
      %v1141 = vrot.slane %v1029, 3
      %v1142 = vsel %vm1085, %v1139, %v1141
      %v1143 = vrot.slane %v1030, 3
      %v1144 = vsel %vm1085, %v1141, %v1143
      %v1145 = vrot.slane %v1031, 3
      %v1146 = vsel %vm1085, %v1143, %v1145
      %v1147 = vrot.slane %v1032, 3
      %v1148 = vsel %vm1085, %v1145, %v1147
      %v1149 = vrot.slane %v1033, 3
      %v1150 = vsel %vm1085, %v1147, %v1149
      %v1151 = vrot.slane %v1034, 3
      %v1152 = vsel %vm1085, %v1149, %v1151
      %v1153 = vrot.slane %v1035, 3
      %v1154 = vsel %vm1085, %v1151, %v1153
      %v1155 = vrot.slane %v1036, 3
      %v1156 = vsel %vm1085, %v1153, %v1155
      %v1157 = vrot.slane %v1037, 3
      %v1158 = vsel %vm1085, %v1155, %v1157
      %v1159 = vrot.slane %v1038, 3
      %v1160 = vsel %vm1085, %v1157, %v1159
      %v1161 = vrot.slane %v1039, 3
      %v1162 = vsel %vm1085, %v1159, %v1161
      %v1163 = vrot.slane %v1040, 3
      %v1164 = vsel %vm1085, %v1161, %v1163
      %v1165 = vrot.slane %v1041, 3
      %v1166 = vsel %vm1085, %v1163, %v1165
      %vm1167 = vcmask 130048
      %v1168 = vsel %vm1167, %v1088, 0
      %v1170 = vsel %vm1167, %v1090, 0
      %v1172 = vsel %vm1167, %v1092, 0
      %v1174 = vsel %vm1167, %v1094, 0
      %v1176 = vsel %vm1167, %v1096, 0
      %v1178 = vsel %vm1167, %v1098, 0
      %v1180 = vsel %vm1167, %v1100, 0
      %v1182 = vsel %vm1167, %v1102, 0
      %v1184 = vsel %vm1167, %v1104, 0
      %v1186 = vsel %vm1167, %v1106, 0
      %v1188 = vsel %vm1167, %v1108, 0
      %v1190 = vsel %vm1167, %v1110, 0
      %v1192 = vsel %vm1167, %v1112, 0
      %v1194 = vsel %vm1167, %v1114, 0
      %v1196 = vsel %vm1167, %v1116, 0
      %v1198 = vsel %vm1167, %v1118, 0
      %v1200 = vsel %vm1167, %v1120, 0
      %v1202 = vsel %vm1167, %v1122, 0
      %v1204 = vsel %vm1167, %v1124, 0
      %v1206 = vsel %vm1167, %v1126, 0
      %v1208 = vsel %vm1167, %v1128, 0
      %v1210 = vsel %vm1167, %v1130, 0
      %v1212 = vsel %vm1167, %v1132, 0
      %v1214 = vsel %vm1167, %v1134, 0
      %v1216 = vsel %vm1167, %v1136, 0
      %v1218 = vsel %vm1167, %v1138, 0
      %v1220 = vsel %vm1167, %v1140, 0
      %v1222 = vsel %vm1167, %v1142, 0
      %v1224 = vsel %vm1167, %v1144, 0
      %v1226 = vsel %vm1167, %v1146, 0
      %v1228 = vsel %vm1167, %v1148, 0
      %v1230 = vsel %vm1167, %v1150, 0
      %v1232 = vsel %vm1167, %v1152, 0
      %v1234 = vsel %vm1167, %v1154, 0
      %v1236 = vsel %vm1167, %v1156, 0
      %v1238 = vsel %vm1167, %v1158, 0
      %v1240 = vsel %vm1167, %v1160, 0
      %v1242 = vsel %vm1167, %v1162, 0
      %v1244 = vsel %vm1167, %v1164, 0
      %v1246 = vsel %vm1167, %v1166, 0
      %v1248 = vsel %vm1167, %v1165, 0
      %1250 = vmatprep.subr.mxu0 0.0
      %1251 = vmatpush1.msra.mxu0 %v1042
      %1252 = vmatprep.subr.mxu0 0.0
      %1253 = vmatpush1.msra.mxu0 %v1043
      %1254 = vmatprep.subr.mxu0 0.0
      %1255 = vmatpush1.msra.mxu0 0.0
      %1256 = vmatprep.subr.mxu0 0.0
      %1257 = vmatpush1.msra.mxu0 0.0
      %1258 = vmatprep.subr.mxu0 0.0
      %1259 = vmatpush1.msra.mxu0 0.0
      %1260 = vmatprep.subr.mxu0 0.0
      %1261 = vmatpush1.msra.mxu0 0.0
      %1262 = vmatprep.subr.mxu0 0.0
      %1263 = vmatpush1.msra.mxu0 0.0
      %1264 = vmatprep.subr.mxu0 0.0
      %1265 = vmatpush1.msra.mxu0 0.0
      %1266 = vmatprep.subr.mxu0 0.0
      %1267 = vmatpush1.msra.mxu0 0.0
      %1268 = vmatprep.subr.mxu0 0.0
      %1269 = vmatpush1.msra.mxu0 0.0
      %1270 = vmatprep.subr.mxu0 0.0
      %1271 = vmatpush1.msra.mxu0 0.0
      %1272 = vmatprep.subr.mxu0 0.0
      %1273 = vmatpush1.msra.mxu0 0.0
      %1274 = vmatprep.subr.mxu0 0.0
      %1275 = vmatpush1.msra.mxu0 0.0
      %1276 = vmatprep.subr.mxu0 0.0
      %1277 = vmatpush1.msra.mxu0 0.0
      %1278 = vmatprep.subr.mxu0 0.0
      %1279 = vmatpush1.msra.mxu0 0.0
      %1280 = vmatprep.subr.mxu0 0.0
      %1281 = vmatpush1.msra.mxu0 0.0
      %1282 = vmatprep.subr.mxu0 0.0
      %1283 = vmatpush1.msra.mxu0 0.0
      %1284 = vmatprep.subr.mxu0 0.0
      %1285 = vmatpush1.msra.mxu0 0.0
      %1286 = vmatprep.subr.mxu0 0.0
      %1287 = vmatpush1.msra.mxu0 0.0
      %1288 = vmatprep.subr.mxu0 0.0
      %1289 = vmatpush1.msra.mxu0 0.0
      %1290 = vmatprep.subr.mxu0 0.0
      %1291 = vmatpush1.msra.mxu0 0.0
      %1292 = vmatprep.subr.mxu0 0.0
      %1293 = vmatpush1.msra.mxu0 0.0
      %1294 = vmatprep.subr.mxu0 0.0
      %1295 = vmatpush1.msra.mxu0 0.0
      %1296 = vmatprep.subr.mxu0 0.0
      %1297 = vmatpush1.msra.mxu0 0.0
      %1298 = vmatprep.subr.mxu0 0.0
      %1299 = vmatpush1.msra.mxu0 0.0
      %1300 = vmatprep.subr.mxu0 0.0
      %1301 = vmatpush1.msra.mxu0 0.0
      %1302 = vmatprep.subr.mxu0 0.0
      %1303 = vmatpush1.msra.mxu0 0.0
      %1304 = vmatprep.subr.mxu0 0.0
      %1305 = vmatpush1.msra.mxu0 0.0
      %1306 = vmatprep.subr.mxu0 0.0
      %1307 = vmatpush1.msra.mxu0 0.0
      %1308 = vmatprep.subr.mxu0 0.0
      %1309 = vmatpush1.msra.mxu0 0.0
      %1310 = vmatprep.subr.mxu0 0.0
      %1311 = vmatpush1.msra.mxu0 0.0
      %1312 = vmatprep.subr.mxu0 0.0
      %1313 = vmatpush1.msra.mxu0 0.0
      %1314 = vmatprep.mubr.f32.mxu0 0.0
      %1315 = vmatmul.mubr.f32.gmra.mrb[0].mxu0 %v1168
      %v1316 = vpop.f32.mrb[0].mxu0
      %v1317 = vadd.f32 0.0, %v1316
      %v1318 = vpop.f32.mrb[0].mxu0
      %1319 = vmatprep.mubr.f32.mxu0 0.0
      %1320 = vmatmul.mubr.f32.gmra.mrb[0].mxu0 %v1170
      %v1321 = vpop.f32.mrb[0].mxu0
      %v1322 = vadd.f32 0.0, %v1321
      %v1323 = vpop.f32.mrb[0].mxu0
      %1324 = vmatprep.mubr.f32.mxu0 0.0
      %1325 = vmatmul.mubr.f32.gmra.mrb[0].mxu0 %v1172
      %v1326 = vpop.f32.mrb[0].mxu0
      %v1327 = vadd.f32 0.0, %v1326
      %v1328 = vpop.f32.mrb[0].mxu0
      %1329 = vmatprep.mubr.f32.mxu0 0.0
      %1330 = vmatmul.mubr.f32.gmra.mrb[0].mxu0 %v1174
      %v1331 = vpop.f32.mrb[0].mxu0
      %v1332 = vadd.f32 0.0, %v1331
      %v1333 = vpop.f32.mrb[0].mxu0
      %1334 = vmatprep.mubr.f32.mxu0 0.0
      %1335 = vmatmul.mubr.f32.gmra.mrb[0].mxu0 %v1176
      %v1336 = vpop.f32.mrb[0].mxu0
      %v1337 = vadd.f32 0.0, %v1336
      %v1338 = vpop.f32.mrb[0].mxu0
      %1339 = vmatprep.mubr.f32.mxu0 0.0
      %1340 = vmatmul.mubr.f32.gmra.mrb[0].mxu0 %v1178
      %v1341 = vpop.f32.mrb[0].mxu0
      %v1342 = vadd.f32 0.0, %v1341
      %v1343 = vpop.f32.mrb[0].mxu0
      %1344 = vmatprep.mubr.f32.mxu0 0.0
      %1345 = vmatmul.mubr.f32.gmra.mrb[0].mxu0 %v1180
      %v1346 = vpop.f32.mrb[0].mxu0
      %v1347 = vadd.f32 0.0, %v1346
      %v1348 = vpop.f32.mrb[0].mxu0
      %1349 = vmatprep.mubr.f32.mxu0 0.0
      %1350 = vmatmul.mubr.f32.gmra.mrb[0].mxu0 %v1182
      %v1351 = vpop.f32.mrb[0].mxu0
      %v1352 = vadd.f32 0.0, %v1351
      %v1353 = vpop.f32.mrb[0].mxu0
      %1354 = vmatprep.mubr.f32.mxu0 0.0
      %1355 = vmatmul.mubr.f32.gmra.mrb[0].mxu0 %v1184
      %v1356 = vpop.f32.mrb[0].mxu0
      %v1357 = vadd.f32 0.0, %v1356
      %v1358 = vpop.f32.mrb[0].mxu0
      %1359 = vmatprep.mubr.f32.mxu0 0.0
      %1360 = vmatmul.mubr.f32.gmra.mrb[0].mxu0 %v1186
      %v1361 = vpop.f32.mrb[0].mxu0
      %v1362 = vadd.f32 0.0, %v1361
      %v1363 = vpop.f32.mrb[0].mxu0
      %1364 = vmatprep.mubr.f32.mxu0 0.0
      %1365 = vmatmul.mubr.f32.gmra.mrb[0].mxu0 %v1188
      %v1366 = vpop.f32.mrb[0].mxu0
      %v1367 = vadd.f32 0.0, %v1366
      %v1368 = vpop.f32.mrb[0].mxu0
      %1369 = vmatprep.mubr.f32.mxu0 0.0
      %1370 = vmatmul.mubr.f32.gmra.mrb[0].mxu0 %v1190
      %v1371 = vpop.f32.mrb[0].mxu0
      %v1372 = vadd.f32 0.0, %v1371
      %v1373 = vpop.f32.mrb[0].mxu0
      %1374 = vmatprep.mubr.f32.mxu0 0.0
      %1375 = vmatmul.mubr.f32.gmra.mrb[0].mxu0 %v1192
      %v1376 = vpop.f32.mrb[0].mxu0
      %v1377 = vadd.f32 0.0, %v1376
      %v1378 = vpop.f32.mrb[0].mxu0
      %1379 = vmatprep.mubr.f32.mxu0 0.0
      %1380 = vmatmul.mubr.f32.gmra.mrb[0].mxu0 %v1194
      %v1381 = vpop.f32.mrb[0].mxu0
      %v1382 = vadd.f32 0.0, %v1381
      %v1383 = vpop.f32.mrb[0].mxu0
      %1384 = vmatprep.mubr.f32.mxu0 0.0
      %1385 = vmatmul.mubr.f32.gmra.mrb[0].mxu0 %v1196
      %v1386 = vpop.f32.mrb[0].mxu0
      %v1387 = vadd.f32 0.0, %v1386
      %v1388 = vpop.f32.mrb[0].mxu0
      %1389 = vmatprep.mubr.f32.mxu0 0.0
      %1390 = vmatmul.mubr.f32.gmra.mrb[0].mxu0 %v1198
      %v1391 = vpop.f32.mrb[0].mxu0
      %v1392 = vadd.f32 0.0, %v1391
      %v1393 = vpop.f32.mrb[0].mxu0
      %1394 = vmatprep.mubr.f32.mxu0 0.0
      %1395 = vmatmul.mubr.f32.gmra.mrb[0].mxu0 %v1200
      %v1396 = vpop.f32.mrb[0].mxu0
      %v1397 = vadd.f32 0.0, %v1396
      %v1398 = vpop.f32.mrb[0].mxu0
      %1399 = vmatprep.mubr.f32.mxu0 0.0
      %1400 = vmatmul.mubr.f32.gmra.mrb[0].mxu0 %v1202
      %v1401 = vpop.f32.mrb[0].mxu0
      %v1402 = vadd.f32 0.0, %v1401
      %v1403 = vpop.f32.mrb[0].mxu0
      %1404 = vmatprep.mubr.f32.mxu0 0.0
      %1405 = vmatmul.mubr.f32.gmra.mrb[0].mxu0 %v1204
      %v1406 = vpop.f32.mrb[0].mxu0
      %v1407 = vadd.f32 0.0, %v1406
      %v1408 = vpop.f32.mrb[0].mxu0
      %1409 = vmatprep.mubr.f32.mxu0 0.0
      %1410 = vmatmul.mubr.f32.gmra.mrb[0].mxu0 %v1206
      %v1411 = vpop.f32.mrb[0].mxu0
      %v1412 = vadd.f32 0.0, %v1411
      %v1413 = vpop.f32.mrb[0].mxu0
      %1414 = vmatprep.mubr.f32.mxu0 0.0
      %1415 = vmatmul.mubr.f32.gmra.mrb[0].mxu0 %v1208
      %v1416 = vpop.f32.mrb[0].mxu0
      %v1417 = vadd.f32 0.0, %v1416
      %v1418 = vpop.f32.mrb[0].mxu0
      %1419 = vmatprep.mubr.f32.mxu0 0.0
      %1420 = vmatmul.mubr.f32.gmra.mrb[0].mxu0 %v1210
      %v1421 = vpop.f32.mrb[0].mxu0
      %v1422 = vadd.f32 0.0, %v1421
      %v1423 = vpop.f32.mrb[0].mxu0
      %1424 = vmatprep.mubr.f32.mxu0 0.0
      %1425 = vmatmul.mubr.f32.gmra.mrb[0].mxu0 %v1212
      %v1426 = vpop.f32.mrb[0].mxu0
      %v1427 = vadd.f32 0.0, %v1426
      %v1428 = vpop.f32.mrb[0].mxu0
      %1429 = vmatprep.mubr.f32.mxu0 0.0
      %1430 = vmatmul.mubr.f32.gmra.mrb[0].mxu0 %v1214
      %v1431 = vpop.f32.mrb[0].mxu0
      %v1432 = vadd.f32 0.0, %v1431
      %v1433 = vpop.f32.mrb[0].mxu0
      %1434 = vmatprep.mubr.f32.mxu0 0.0
      %1435 = vmatmul.mubr.f32.gmra.mrb[0].mxu0 %v1216
      %v1436 = vpop.f32.mrb[0].mxu0
      %v1437 = vadd.f32 0.0, %v1436
      %v1438 = vpop.f32.mrb[0].mxu0
      %1439 = vmatprep.mubr.f32.mxu0 0.0
      %1440 = vmatmul.mubr.f32.gmra.mrb[0].mxu0 %v1218
      %v1441 = vpop.f32.mrb[0].mxu0
      %v1442 = vadd.f32 0.0, %v1441
      %v1443 = vpop.f32.mrb[0].mxu0
      %1444 = vmatprep.mubr.f32.mxu0 0.0
      %1445 = vmatmul.mubr.f32.gmra.mrb[0].mxu0 %v1220
      %v1446 = vpop.f32.mrb[0].mxu0
      %v1447 = vadd.f32 0.0, %v1446
      %v1448 = vpop.f32.mrb[0].mxu0
      %1449 = vmatprep.mubr.f32.mxu0 0.0
      %1450 = vmatmul.mubr.f32.gmra.mrb[0].mxu0 %v1222
      %v1451 = vpop.f32.mrb[0].mxu0
      %v1452 = vadd.f32 0.0, %v1451
      %v1453 = vpop.f32.mrb[0].mxu0
      %1454 = vmatprep.mubr.f32.mxu0 0.0
      %1455 = vmatmul.mubr.f32.gmra.mrb[0].mxu0 %v1224
      %v1456 = vpop.f32.mrb[0].mxu0
      %v1457 = vadd.f32 0.0, %v1456
      %v1458 = vpop.f32.mrb[0].mxu0
      %1459 = vmatprep.mubr.f32.mxu0 0.0
      %1460 = vmatmul.mubr.f32.gmra.mrb[0].mxu0 %v1226
      %v1461 = vpop.f32.mrb[0].mxu0
      %v1462 = vadd.f32 0.0, %v1461
      %v1463 = vpop.f32.mrb[0].mxu0
      %1464 = vmatprep.mubr.f32.mxu0 0.0
      %1465 = vmatmul.mubr.f32.gmra.mrb[0].mxu0 %v1228
      %v1466 = vpop.f32.mrb[0].mxu0
      %v1467 = vadd.f32 0.0, %v1466
      %v1468 = vpop.f32.mrb[0].mxu0
      %1469 = vmatprep.mubr.f32.mxu0 0.0
      %1470 = vmatmul.mubr.f32.gmra.mrb[0].mxu0 %v1230
      %v1471 = vpop.f32.mrb[0].mxu0
      %v1472 = vadd.f32 0.0, %v1471
      %v1473 = vpop.f32.mrb[0].mxu0
      %1474 = vmatprep.mubr.f32.mxu0 0.0
      %1475 = vmatmul.mubr.f32.gmra.mrb[0].mxu0 %v1232
      %v1476 = vpop.f32.mrb[0].mxu0
      %v1477 = vadd.f32 0.0, %v1476
      %v1478 = vpop.f32.mrb[0].mxu0
      %1479 = vmatprep.mubr.f32.mxu0 0.0
      %1480 = vmatmul.mubr.f32.gmra.mrb[0].mxu0 %v1234
      %v1481 = vpop.f32.mrb[0].mxu0
      %v1482 = vadd.f32 0.0, %v1481
      %v1483 = vpop.f32.mrb[0].mxu0
      %1484 = vmatprep.mubr.f32.mxu0 0.0
      %1485 = vmatmul.mubr.f32.gmra.mrb[0].mxu0 %v1236
      %v1486 = vpop.f32.mrb[0].mxu0
      %v1487 = vadd.f32 0.0, %v1486
      %v1488 = vpop.f32.mrb[0].mxu0
      %1489 = vmatprep.mubr.f32.mxu0 0.0
      %1490 = vmatmul.mubr.f32.gmra.mrb[0].mxu0 %v1238
      %v1491 = vpop.f32.mrb[0].mxu0
      %v1492 = vadd.f32 0.0, %v1491
      %v1493 = vpop.f32.mrb[0].mxu0
      %1494 = vmatprep.mubr.f32.mxu0 0.0
      %1495 = vmatmul.mubr.f32.gmra.mrb[0].mxu0 %v1240
      %v1496 = vpop.f32.mrb[0].mxu0
      %v1497 = vadd.f32 0.0, %v1496
      %v1498 = vpop.f32.mrb[0].mxu0
      %1499 = vmatprep.mubr.f32.mxu0 0.0
      %1500 = vmatmul.mubr.f32.gmra.mrb[0].mxu0 %v1242
      %v1501 = vpop.f32.mrb[0].mxu0
      %v1502 = vadd.f32 0.0, %v1501
      %v1503 = vpop.f32.mrb[0].mxu0
      %1504 = vmatprep.mubr.f32.mxu0 0.0
      %1505 = vmatmul.mubr.f32.gmra.mrb[0].mxu0 %v1244
      %v1506 = vpop.f32.mrb[0].mxu0
      %v1507 = vadd.f32 0.0, %v1506
      %v1508 = vpop.f32.mrb[0].mxu0
      %1509 = vmatprep.mubr.f32.mxu0 0.0
      %1510 = vmatmul.mubr.f32.gmra.mrb[0].mxu0 %v1246
      %v1511 = vpop.f32.mrb[0].mxu0
      %v1512 = vadd.f32 0.0, %v1511
      %v1513 = vpop.f32.mrb[0].mxu0
      %1514 = vmatprep.mubr.f32.mxu0 0.0
      %1515 = vmatmul.mubr.f32.gmra.mrb[0].mxu0 %v1248
      %v1516 = vpop.f32.mrb[0].mxu0
      %v1517 = vadd.f32 0.0, %v1516
      %v1518 = vpop.f32.mrb[0].mxu0
      %1519 = vdwg.mxu0
      %vm1520 = vcmask 261120
      %1521 = vst.msk [vmem:[%s208] sm:$0xff] %vm1520, %v1317
      %1522 = vst.msk [vmem:[%s208 + $0x8] sm:$0xff] %vm1520, %v1322
      %1523 = vst.msk [vmem:[%s208 + $0x10] sm:$0xff] %vm1520, %v1327
      %1524 = vst.msk [vmem:[%s208 + $0x18] sm:$0xff] %vm1520, %v1332
      %1525 = vst.msk [vmem:[%s208 + $0x20] sm:$0xff] %vm1520, %v1337
      %1526 = vst.msk [vmem:[%s208 + $0x28] sm:$0xff] %vm1520, %v1342
      %1527 = vst.msk [vmem:[%s208 + $0x30] sm:$0xff] %vm1520, %v1347
      %1528 = vst.msk [vmem:[%s208 + $0x38] sm:$0xff] %vm1520, %v1352
      %1529 = vst.msk [vmem:[%s208 + $0x40] sm:$0xff] %vm1520, %v1357
      %1530 = vst.msk [vmem:[%s208 + $0x48] sm:$0xff] %vm1520, %v1362
      %1531 = vst.msk [vmem:[%s208 + $0x50] sm:$0xff] %vm1520, %v1367
      %1532 = vst.msk [vmem:[%s208 + $0x58] sm:$0xff] %vm1520, %v1372
      %1533 = vst.msk [vmem:[%s208 + $0x60] sm:$0xff] %vm1520, %v1377
      %1534 = vst.msk [vmem:[%s208 + $0x68] sm:$0xff] %vm1520, %v1382
      %1535 = vst.msk [vmem:[%s208 + $0x70] sm:$0xff] %vm1520, %v1387
      %1536 = vst.msk [vmem:[%s208 + $0x78] sm:$0xff] %vm1520, %v1392
      %1537 = vst.msk [vmem:[%s208 + $0x80] sm:$0xff] %vm1520, %v1397
      %1538 = vst.msk [vmem:[%s208 + $0x88] sm:$0xff] %vm1520, %v1402
      %1539 = vst.msk [vmem:[%s208 + $0x90] sm:$0xff] %vm1520, %v1407
      %1540 = vst.msk [vmem:[%s208 + $0x98] sm:$0xff] %vm1520, %v1412
      %1541 = vst.msk [vmem:[%s208 + $0xa0] sm:$0xff] %vm1520, %v1417
      %1542 = vst.msk [vmem:[%s208 + $0xa8] sm:$0xff] %vm1520, %v1422
      %1543 = vst.msk [vmem:[%s208 + $0xb0] sm:$0xff] %vm1520, %v1427
      %1544 = vst.msk [vmem:[%s208 + $0xb8] sm:$0xff] %vm1520, %v1432
      %1545 = vst.msk [vmem:[%s208 + $0xc0] sm:$0xff] %vm1520, %v1437
      %1546 = vst.msk [vmem:[%s208 + $0xc8] sm:$0xff] %vm1520, %v1442
      %1547 = vst.msk [vmem:[%s208 + $0xd0] sm:$0xff] %vm1520, %v1447
      %1548 = vst.msk [vmem:[%s208 + $0xd8] sm:$0xff] %vm1520, %v1452
      %1549 = vst.msk [vmem:[%s208 + $0xe0] sm:$0xff] %vm1520, %v1457
      %1550 = vst.msk [vmem:[%s208 + $0xe8] sm:$0xff] %vm1520, %v1462
      %1551 = vst.msk [vmem:[%s208 + $0xf0] sm:$0xff] %vm1520, %v1467
      %1552 = vst.msk [vmem:[%s208 + $0xf8] sm:$0xff] %vm1520, %v1472
      %1553 = vst.msk [vmem:[%s208 + $0x100] sm:$0xff] %vm1520, %v1477
      %1554 = vst.msk [vmem:[%s208 + $0x108] sm:$0xff] %vm1520, %v1482
      %1555 = vst.msk [vmem:[%s208 + $0x110] sm:$0xff] %vm1520, %v1487
      %1556 = vst.msk [vmem:[%s208 + $0x118] sm:$0xff] %vm1520, %v1492
      %1557 = vst.msk [vmem:[%s208 + $0x120] sm:$0xff] %vm1520, %v1497
      %1558 = vst.msk [vmem:[%s208 + $0x128] sm:$0xff] %vm1520, %v1502
      %1559 = vst.msk [vmem:[%s208 + $0x130] sm:$0xff] %vm1520, %v1507
      %1560 = vst.msk [vmem:[%s208 + $0x138] sm:$0xff] %vm1520, %v1512
      %vm1561 = vcmask 257024
      %1562 = vst.msk [vmem:[%s208 + $0x140] sm:$0xf] %vm1561, %v1517
      %v1563 = vsel %vm1520, %v1317, 0.0
      %v1564 = vsel %vm1520, %v1322, 0.0
      %v1565 = vadd.f32 %v1563, %v1564
      %v1566 = vsel %vm1520, %v1327, 0.0
      %v1567 = vadd.f32 %v1565, %v1566
      %v1568 = vsel %vm1520, %v1332, 0.0
      %v1569 = vadd.f32 %v1567, %v1568
      %v1570 = vsel %vm1520, %v1337, 0.0
      %v1571 = vadd.f32 %v1569, %v1570
      %v1572 = vsel %vm1520, %v1342, 0.0
      %v1573 = vadd.f32 %v1571, %v1572
      %v1574 = vsel %vm1520, %v1347, 0.0
      %v1575 = vadd.f32 %v1573, %v1574
      %v1576 = vsel %vm1520, %v1352, 0.0
      %v1577 = vadd.f32 %v1575, %v1576
      %v1578 = vsel %vm1520, %v1357, 0.0
      %v1579 = vadd.f32 %v1577, %v1578
      %v1580 = vsel %vm1520, %v1362, 0.0
      %v1581 = vadd.f32 %v1579, %v1580
      %v1582 = vsel %vm1520, %v1367, 0.0
      %v1583 = vadd.f32 %v1581, %v1582
      %v1584 = vsel %vm1520, %v1372, 0.0
      %v1585 = vadd.f32 %v1583, %v1584
      %v1586 = vsel %vm1520, %v1377, 0.0
      %v1587 = vadd.f32 %v1585, %v1586
      %v1588 = vsel %vm1520, %v1382, 0.0
      %v1589 = vadd.f32 %v1587, %v1588
      %v1590 = vsel %vm1520, %v1387, 0.0
      %v1591 = vadd.f32 %v1589, %v1590
      %v1592 = vsel %vm1520, %v1392, 0.0
      %v1593 = vadd.f32 %v1591, %v1592
      %v1594 = vsel %vm1520, %v1397, 0.0
      %v1595 = vadd.f32 %v1593, %v1594
      %v1596 = vsel %vm1520, %v1402, 0.0
      %v1597 = vadd.f32 %v1595, %v1596
      %v1598 = vsel %vm1520, %v1407, 0.0
      %v1599 = vadd.f32 %v1597, %v1598
      %v1600 = vsel %vm1520, %v1412, 0.0
      %v1601 = vadd.f32 %v1599, %v1600
      %v1602 = vsel %vm1520, %v1417, 0.0
      %v1603 = vadd.f32 %v1601, %v1602
      %v1604 = vsel %vm1520, %v1422, 0.0
      %v1605 = vadd.f32 %v1603, %v1604
      %v1606 = vsel %vm1520, %v1427, 0.0
      %v1607 = vadd.f32 %v1605, %v1606
      %v1608 = vsel %vm1520, %v1432, 0.0
      %v1609 = vadd.f32 %v1607, %v1608
      %v1610 = vsel %vm1520, %v1437, 0.0
      %v1611 = vadd.f32 %v1609, %v1610
      %v1612 = vsel %vm1520, %v1442, 0.0
      %v1613 = vadd.f32 %v1611, %v1612
      %v1614 = vsel %vm1520, %v1447, 0.0
      %v1615 = vadd.f32 %v1613, %v1614
      %v1616 = vsel %vm1520, %v1452, 0.0
      %v1617 = vadd.f32 %v1615, %v1616
      %v1618 = vsel %vm1520, %v1457, 0.0
      %v1619 = vadd.f32 %v1617, %v1618
      %v1620 = vsel %vm1520, %v1462, 0.0
      %v1621 = vadd.f32 %v1619, %v1620
      %v1622 = vsel %vm1520, %v1467, 0.0
      %v1623 = vadd.f32 %v1621, %v1622
      %v1624 = vsel %vm1520, %v1472, 0.0
      %v1625 = vadd.f32 %v1623, %v1624
      %v1626 = vsel %vm1520, %v1477, 0.0
      %v1627 = vadd.f32 %v1625, %v1626
      %v1628 = vsel %vm1520, %v1482, 0.0
      %v1629 = vadd.f32 %v1627, %v1628
      %v1630 = vsel %vm1520, %v1487, 0.0
      %v1631 = vadd.f32 %v1629, %v1630
      %v1632 = vsel %vm1520, %v1492, 0.0
      %v1633 = vadd.f32 %v1631, %v1632
      %v1634 = vsel %vm1520, %v1497, 0.0
      %v1635 = vadd.f32 %v1633, %v1634
      %v1636 = vsel %vm1520, %v1502, 0.0
      %v1637 = vadd.f32 %v1635, %v1636
      %v1638 = vsel %vm1520, %v1507, 0.0
      %v1639 = vadd.f32 %v1637, %v1638
      %v1640 = vsel %vm1520, %v1512, 0.0
      %v1641 = vadd.f32 %v1639, %v1640
      %v1642 = vsel %vm1561, %v1517, 0.0
      %v1643 = vadd.f32 %v1641, %v1642
      %v1644 = vrot.slane %v1643, 4
      %v1645 = vadd.f32 %v1643, %v1644
      %v1646 = vrot.slane %v1645, 2
      %v1647 = vadd.f32 %v1645, %v1646
      %v1648 = vrot.slane %v1647, 1
      %v1649 = vadd.f32 %v1647, %v1648
      %vm1650 = vcmask 253952
      %1651 = vst.msk [vmem:[%s211] sm:$0x1] %vm1650, %v1649
      %v1652 = vmul.f32 %v1317, %v1317
      %v1653 = vmul.f32 %v1322, %v1322
      %v1654 = vmul.f32 %v1327, %v1327
      %v1655 = vmul.f32 %v1332, %v1332
      %v1656 = vmul.f32 %v1337, %v1337
      %v1657 = vmul.f32 %v1342, %v1342
      %v1658 = vmul.f32 %v1347, %v1347
      %v1659 = vmul.f32 %v1352, %v1352
      %v1660 = vmul.f32 %v1357, %v1357
      %v1661 = vmul.f32 %v1362, %v1362
      %v1662 = vmul.f32 %v1367, %v1367
      %v1663 = vmul.f32 %v1372, %v1372
      %v1664 = vmul.f32 %v1377, %v1377
      %v1665 = vmul.f32 %v1382, %v1382
      %v1666 = vmul.f32 %v1387, %v1387
      %v1667 = vmul.f32 %v1392, %v1392
      %v1668 = vmul.f32 %v1397, %v1397
      %v1669 = vmul.f32 %v1402, %v1402
      %v1670 = vmul.f32 %v1407, %v1407
      %v1671 = vmul.f32 %v1412, %v1412
      %v1672 = vmul.f32 %v1417, %v1417
      %v1673 = vmul.f32 %v1422, %v1422
      %v1674 = vmul.f32 %v1427, %v1427
      %v1675 = vmul.f32 %v1432, %v1432
      %v1676 = vmul.f32 %v1437, %v1437
      %v1677 = vmul.f32 %v1442, %v1442
      %v1678 = vmul.f32 %v1447, %v1447
      %v1679 = vmul.f32 %v1452, %v1452
      %v1680 = vmul.f32 %v1457, %v1457
      %v1681 = vmul.f32 %v1462, %v1462
      %v1682 = vmul.f32 %v1467, %v1467
      %v1683 = vmul.f32 %v1472, %v1472
      %v1684 = vmul.f32 %v1477, %v1477
      %v1685 = vmul.f32 %v1482, %v1482
      %v1686 = vmul.f32 %v1487, %v1487
      %v1687 = vmul.f32 %v1492, %v1492
      %v1688 = vmul.f32 %v1497, %v1497
      %v1689 = vmul.f32 %v1502, %v1502
      %v1690 = vmul.f32 %v1507, %v1507
      %v1691 = vmul.f32 %v1512, %v1512
      %v1692 = vmul.f32 %v1517, %v1517
      %v1693 = vsel %vm1520, %v1652, 0.0
      %v1694 = vsel %vm1520, %v1653, 0.0
      %v1695 = vadd.f32 %v1693, %v1694
      %v1696 = vsel %vm1520, %v1654, 0.0
      %v1697 = vadd.f32 %v1695, %v1696
      %v1698 = vsel %vm1520, %v1655, 0.0
      %v1699 = vadd.f32 %v1697, %v1698
      %v1700 = vsel %vm1520, %v1656, 0.0
      %v1701 = vadd.f32 %v1699, %v1700
      %v1702 = vsel %vm1520, %v1657, 0.0
      %v1703 = vadd.f32 %v1701, %v1702
      %v1704 = vsel %vm1520, %v1658, 0.0
      %v1705 = vadd.f32 %v1703, %v1704
      %v1706 = vsel %vm1520, %v1659, 0.0
      %v1707 = vadd.f32 %v1705, %v1706
      %v1708 = vsel %vm1520, %v1660, 0.0
      %v1709 = vadd.f32 %v1707, %v1708
      %v1710 = vsel %vm1520, %v1661, 0.0
      %v1711 = vadd.f32 %v1709, %v1710
      %v1712 = vsel %vm1520, %v1662, 0.0
      %v1713 = vadd.f32 %v1711, %v1712
      %v1714 = vsel %vm1520, %v1663, 0.0
      %v1715 = vadd.f32 %v1713, %v1714
      %v1716 = vsel %vm1520, %v1664, 0.0
      %v1717 = vadd.f32 %v1715, %v1716
      %v1718 = vsel %vm1520, %v1665, 0.0
      %v1719 = vadd.f32 %v1717, %v1718
      %v1720 = vsel %vm1520, %v1666, 0.0
      %v1721 = vadd.f32 %v1719, %v1720
      %v1722 = vsel %vm1520, %v1667, 0.0
      %v1723 = vadd.f32 %v1721, %v1722
      %v1724 = vsel %vm1520, %v1668, 0.0
      %v1725 = vadd.f32 %v1723, %v1724
      %v1726 = vsel %vm1520, %v1669, 0.0
      %v1727 = vadd.f32 %v1725, %v1726
      %v1728 = vsel %vm1520, %v1670, 0.0
      %v1729 = vadd.f32 %v1727, %v1728
      %v1730 = vsel %vm1520, %v1671, 0.0
      %v1731 = vadd.f32 %v1729, %v1730
      %v1732 = vsel %vm1520, %v1672, 0.0
      %v1733 = vadd.f32 %v1731, %v1732
      %v1734 = vsel %vm1520, %v1673, 0.0
      %v1735 = vadd.f32 %v1733, %v1734
      %v1736 = vsel %vm1520, %v1674, 0.0
      %v1737 = vadd.f32 %v1735, %v1736
      %v1738 = vsel %vm1520, %v1675, 0.0
      %v1739 = vadd.f32 %v1737, %v1738
      %v1740 = vsel %vm1520, %v1676, 0.0
      %v1741 = vadd.f32 %v1739, %v1740
      %v1742 = vsel %vm1520, %v1677, 0.0
      %v1743 = vadd.f32 %v1741, %v1742
      %v1744 = vsel %vm1520, %v1678, 0.0
      %v1745 = vadd.f32 %v1743, %v1744
      %v1746 = vsel %vm1520, %v1679, 0.0
      %v1747 = vadd.f32 %v1745, %v1746
      %v1748 = vsel %vm1520, %v1680, 0.0
      %v1749 = vadd.f32 %v1747, %v1748
      %v1750 = vsel %vm1520, %v1681, 0.0
      %v1751 = vadd.f32 %v1749, %v1750
      %v1752 = vsel %vm1520, %v1682, 0.0
      %v1753 = vadd.f32 %v1751, %v1752
      %v1754 = vsel %vm1520, %v1683, 0.0
      %v1755 = vadd.f32 %v1753, %v1754
      %v1756 = vsel %vm1520, %v1684, 0.0
      %v1757 = vadd.f32 %v1755, %v1756
      %v1758 = vsel %vm1520, %v1685, 0.0
      %v1759 = vadd.f32 %v1757, %v1758
      %v1760 = vsel %vm1520, %v1686, 0.0
      %v1761 = vadd.f32 %v1759, %v1760
      %v1762 = vsel %vm1520, %v1687, 0.0
      %v1763 = vadd.f32 %v1761, %v1762
      %v1764 = vsel %vm1520, %v1688, 0.0
      %v1765 = vadd.f32 %v1763, %v1764
      %v1766 = vsel %vm1520, %v1689, 0.0
      %v1767 = vadd.f32 %v1765, %v1766
      %v1768 = vsel %vm1520, %v1690, 0.0
      %v1769 = vadd.f32 %v1767, %v1768
      %v1770 = vsel %vm1520, %v1691, 0.0
      %v1771 = vadd.f32 %v1769, %v1770
      %v1772 = vsel %vm1561, %v1692, 0.0
      %v1773 = vadd.f32 %v1771, %v1772
      %v1774 = vrot.slane %v1773, 4
      %v1775 = vadd.f32 %v1773, %v1774
      %v1776 = vrot.slane %v1775, 2
      %v1777 = vadd.f32 %v1775, %v1776
      %v1778 = vrot.slane %v1777, 1
      %v1779 = vadd.f32 %v1777, %v1778
      %1780 = vst.msk [vmem:[%s214] sm:$0x1] %vm1650, %v1779
      %p1781 = scmp.lt.s32.totalorder %s16, 1
      %s1782 = scalar_select %p1781, %s16, 1
      %s1783 = smul.addr %s1782, 41
      %s1784 = smul.addr %s1783, 8
      %s1785 = scalar_lea.vmem %s2, %s1784
      %p1786 = scmp.lt.s32.totalorder %s16, 1
      %s1787 = scalar_select %p1786, %s16, 1
      %s1788 = scalar_lea.vmem %s3, %s1787
      %p1789 = scmp.lt.s32.totalorder %s16, 1
      %s1790 = scalar_select %p1789, %s16, 1
      %s1791 = scalar_lea.vmem %s4, %s1790
      // Predicated region
      $region29: #{upsample_layer.2} parent=27 // pred_check
        %p1792 = pneg %p81
      $region30: #{upsample_layer.2} parent=27 // pred_check_branch
        %1794 = sbr.rel (%p1792) target = $region32
      $region31: #{upsample_layer.2} parent=27 // pred_region
        _
      $region32: #{upsample_layer.2} parent=27 // pred_fallthru
        _
      // Predicated region
      $region33: #{upsample_layer.2} parent=27 // pred_check
        %p1795 = pneg %p107
      $region34: #{upsample_layer.2} parent=27 // pred_check_branch
        %1797 = sbr.rel (%p1795) target = $region36
      $region35: #{upsample_layer.2} parent=27 // pred_region
        _
      $region36: #{upsample_layer.2} parent=27 // pred_fallthru
        _
      // Predicated region
      $region37: #{upsample_layer.2} parent=27 // pred_check
        %p1798 = pneg %p133
      $region38: #{upsample_layer.2} parent=27 // pred_check_branch
        %1800 = sbr.rel (%p1798) target = $region40
      $region39: #{upsample_layer.2} parent=27 // pred_region
        _
      $region40: #{upsample_layer.2} parent=27 // pred_fallthru
        _
    $region28: #{upsample_layer.2} parent=5 // pred_fallthru
      _
    %p1801 = scmp.le.s32.totalorder 2, %s11
    // Predicated region
    $region41: #{upsample_layer.2} parent=5 // pred_check
      %p1802 = pneg %p1801
    $region42: #{upsample_layer.2} parent=5 // pred_check_branch
      %1804 = sbr.rel (%p1802) target = $region44
    $region43: #{upsample_layer.2} parent=5 // pred_region
      %s1805 = ssub.s32 %s11, 2
      // Predicated region
      $region45: #{upsample_layer.2} parent=43 // pred_check
        %p1806 = pneg %p87
      $region46: #{upsample_layer.2} parent=43 // pred_check_branch
        %1808 = sbr.rel (%p1806) target = $region48
      $region47: #{upsample_layer.2} parent=43 // pred_region
        %p1809 = scmp.lt.s32.totalorder %s17, 1
        %s1810 = scalar_select %p1809, %s17, 1
        %s1811 = smul.addr %s1810, 41
        %s1812 = smul.addr %s1811, 8
        %s1813 = scalar_lea.vmem %s2, %s1812
      $region48: #{upsample_layer.2} parent=43 // pred_fallthru
        _
      // Predicated region
      $region49: #{upsample_layer.2} parent=43 // pred_check
        %p1814 = pneg %p113
      $region50: #{upsample_layer.2} parent=43 // pred_check_branch
        %1816 = sbr.rel (%p1814) target = $region52
      $region51: #{upsample_layer.2} parent=43 // pred_region
        %p1817 = scmp.lt.s32.totalorder %s17, 1
        %s1818 = scalar_select %p1817, %s17, 1
        %s1819 = scalar_lea.vmem %s3, %s1818
      $region52: #{upsample_layer.2} parent=43 // pred_fallthru
        _
      // Predicated region
      $region53: #{upsample_layer.2} parent=43 // pred_check
        %p1820 = pneg %p139
      $region54: #{upsample_layer.2} parent=43 // pred_check_branch
        %1822 = sbr.rel (%p1820) target = $region56
      $region55: #{upsample_layer.2} parent=43 // pred_region
        %p1823 = scmp.lt.s32.totalorder %s17, 1
        %s1824 = scalar_select %p1823, %s17, 1
        %s1825 = scalar_lea.vmem %s4, %s1824
      $region56: #{upsample_layer.2} parent=43 // pred_fallthru
        _
    $region44: #{upsample_layer.2} parent=5 // pred_fallthru
      _
  $region6: #{upsample_layer.2} parent=0 // loop_footer
    %s15 = sadd.s32 1, %s11
  $region7: #{upsample_layer.2} parent=0 // loop_footer_branch
    %10 = sbr.rel target = $region3
  $region8: #{upsample_layer.2} parent=0 // loop_exit
    _

</llo_original>
